<compile_context>
chip_gen: v6e
topology: v6e:2x2x1
jax: 0.10.0
libtpu: 0.0.40
codegen_flags: <defaults>
</compile_context>

<pallas_src>
from functools import partial

import jax
import jax.numpy as jnp
from jax.experimental import pallas as pl
from jax.experimental.pallas import tpu as pltpu

EPS = 1e-5


def _pick_tile(n, candidates):
    for c in candidates:
        if n % c == 0:
            return c
    return n


# --------------------------------------------------------------------------
# Pass 1: per-feature batch statistics (sum, sum of squares) for imgs / texts.
# Outputs stay resident across the batch grid axis and are accumulated.
# --------------------------------------------------------------------------
def bn_stats_kernel(imgs_ref, texts_ref, s_i_ref, ss_i_ref, s_t_ref, ss_t_ref):
    @pl.when(pl.program_id(0) == 0)
    def _():
        s_i_ref[...] = jnp.zeros_like(s_i_ref)
        ss_i_ref[...] = jnp.zeros_like(ss_i_ref)
        s_t_ref[...] = jnp.zeros_like(s_t_ref)
        ss_t_ref[...] = jnp.zeros_like(ss_t_ref)

    xi = imgs_ref[...].astype(jnp.float32)
    xt = texts_ref[...].astype(jnp.float32)
    s_i_ref[...] += jnp.sum(xi, axis=0, keepdims=True)
    ss_i_ref[...] += jnp.sum(xi * xi, axis=0, keepdims=True)
    s_t_ref[...] += jnp.sum(xt, axis=0, keepdims=True)
    ss_t_ref[...] += jnp.sum(xt * xt, axis=0, keepdims=True)


# --------------------------------------------------------------------------
# Pass 2: fused gated / residual composer.
# grid = (batch_tiles, k_tiles_of_res_hidden)
#   i ("parallel"):  output tile (tb, D)
#   j ("arbitrary"): K-tile of the (2D,2D)/(2D,D) res-composer matmuls,
#                    accumulated into f2_acc scratch.
# --------------------------------------------------------------------------
def tirg_fused_kernel(a_ref, imgs_ref, texts_ref,
                      sc1i_ref, sh1i_ref, sc1t_ref, sh1t_ref,
                      sc2i_ref, sh2i_ref, sc2t_ref, sh2t_ref,
                      w1i_ref, w1t_ref, b1_ref,
                      w2ai_ref, w2at_ref, b2a_ref,
                      w2b_ref, b2b_ref,
                      out_ref,
                      f1_acc, f2_acc, hi2_buf, ht2_buf):
    j = pl.program_id(1)
    n_j = pl.num_programs(1)

    # Everything that depends only on the batch tile: once per i (at j == 0).
    @pl.when(j == 0)
    def _():
        imgs = imgs_ref[...].astype(jnp.float32)
        texts = texts_ref[...].astype(jnp.float32)

        # gated_feature_composer: BN1-affine -> relu -> Linear(2D, D)
        hi1 = jnp.maximum(imgs * sc1i_ref[...] + sh1i_ref[...], 0.0).astype(jnp.bfloat16)
        ht1 = jnp.maximum(texts * sc1t_ref[...] + sh1t_ref[...], 0.0).astype(jnp.bfloat16)
        f1 = jnp.dot(hi1, w1i_ref[...], preferred_element_type=jnp.float32)
        f1 = f1 + jnp.dot(ht1, w1t_ref[...], preferred_element_type=jnp.float32)
        f1_acc[...] = f1 + b1_ref[...]
        f2_acc[...] = jnp.zeros_like(f2_acc)

        # res_info_composer BN2 activations, cached in bf16 for all K tiles.
        hi2_buf[...] = jnp.maximum(imgs * sc2i_ref[...] + sh2i_ref[...],
                                   0.0).astype(jnp.bfloat16)
        ht2_buf[...] = jnp.maximum(texts * sc2t_ref[...] + sh2t_ref[...],
                                   0.0).astype(jnp.bfloat16)

    # Steady-state inner loop: K-tile j of the hidden (2D) dim, pure MXU work.
    m = jnp.dot(hi2_buf[...], w2ai_ref[...], preferred_element_type=jnp.float32)
    m = m + jnp.dot(ht2_buf[...], w2at_ref[...], preferred_element_type=jnp.float32)
    m = jnp.maximum(m + b2a_ref[...], 0.0).astype(jnp.bfloat16)
    f2_acc[...] += jnp.dot(m, w2b_ref[...], preferred_element_type=jnp.float32)

    @pl.when(j == n_j - 1)
    def _():
        a0 = a_ref[0]
        a1 = a_ref[1]
        imgs = imgs_ref[...].astype(jnp.float32)
        f2 = f2_acc[...] + b2b_ref[...]
        f = jax.nn.sigmoid(f1_acc[...]) * imgs * a0 + f2 * a1
        out_ref[...] = f.astype(out_ref.dtype)


@partial(jax.jit, static_argnames=("tb", "tj"))
def tirg_forward(imgs, texts, params, *, tb=None, tj=None):
    """imgs: (B, D), texts: (B, D) or (B, 1, D). Returns (B, D)."""
    if texts.ndim > 2:
        texts = jnp.squeeze(texts, axis=1)
    B, D = imgs.shape
    D2 = 2 * D

    (a, g1, be1, g2, be2,
     w1i, w1t, b1, w2ai, w2at, b2a, w2b, b2b) = params

    if tb is None:
        tb = _pick_tile(B, (256, 128, 64, 32, 16, 8))
    if tj is None:
        tj = _pick_tile(D2, (512, 256, 128))
    assert B % tb == 0 and D2 % tj == 0

    # ---------------- pass 1: BN batch statistics (Pallas) ----------------
    n_sb = B // tb
    stat_blk = pl.BlockSpec((tb, D), lambda i: (i, 0))
    stat_out = pl.BlockSpec((1, D), lambda i: (0, 0))
    s_i, ss_i, s_t, ss_t = pl.pallas_call(
        bn_stats_kernel,
        out_shape=[jax.ShapeDtypeStruct((1, D), jnp.float32)] * 4,
        grid_spec=pltpu.PrefetchScalarGridSpec(
            num_scalar_prefetch=0,
            grid=(n_sb,),
            in_specs=[stat_blk, stat_blk],
            out_specs=[stat_out] * 4),
        compiler_params=pltpu.CompilerParams(
            dimension_semantics=("arbitrary",)),
    )(imgs, texts)

    # Fold BN affine into per-feature scale/shift (tiny (1,D) XLA math).
    inv_b = 1.0 / B
    mean_i = s_i * inv_b
    mean_t = s_t * inv_b
    var_i = ss_i * inv_b - mean_i * mean_i
    var_t = ss_t * inv_b - mean_t * mean_t
    rinv_i = jax.lax.rsqrt(var_i + EPS)
    rinv_t = jax.lax.rsqrt(var_t + EPS)

    def fold(g, be):
        gi, gt = g[:, :D], g[:, D:]
        bi, bt = be[:, :D], be[:, D:]
        sci = gi * rinv_i
        sct = gt * rinv_t
        return sci, bi - mean_i * sci, sct, bt - mean_t * sct

    sc1i, sh1i, sc1t, sh1t = fold(g1, be1)
    sc2i, sh2i, sc2t, sh2t = fold(g2, be2)

    # ---------------- pass 2: fused composer (Pallas) ----------------
    n_b, n_j = B // tb, D2 // tj

    smem = pl.BlockSpec(memory_space=pltpu.SMEM)
    xblk = pl.BlockSpec((tb, D), lambda i, j: (i, 0))
    row = pl.BlockSpec((1, D), lambda i, j: (0, 0))

    in_specs = [
        smem,                                            # a
        xblk, xblk,                                      # imgs, texts
        row, row, row, row,                              # sc1i, sh1i, sc1t, sh1t
        row, row, row, row,                              # sc2i, sh2i, sc2t, sh2t
        pl.BlockSpec((D, D), lambda i, j: (0, 0)),       # w1i
        pl.BlockSpec((D, D), lambda i, j: (0, 0)),       # w1t
        row,                                             # b1
        pl.BlockSpec((D, tj), lambda i, j: (0, j)),      # w2a img half, col tile j
        pl.BlockSpec((D, tj), lambda i, j: (0, j)),      # w2a txt half, col tile j
        pl.BlockSpec((1, tj), lambda i, j: (0, j)),      # b2a tile j
        pl.BlockSpec((tj, D), lambda i, j: (j, 0)),      # w2b row tile j
        row,                                             # b2b
    ]

    return pl.pallas_call(
        tirg_fused_kernel,
        out_shape=jax.ShapeDtypeStruct((B, D), imgs.dtype),
        grid_spec=pltpu.PrefetchScalarGridSpec(
            num_scalar_prefetch=0,
            grid=(n_b, n_j),
            in_specs=in_specs,
            out_specs=xblk,
            scratch_shapes=[pltpu.VMEM((tb, D), jnp.float32),   # f1_acc
                            pltpu.VMEM((tb, D), jnp.float32),   # f2_acc
                            pltpu.VMEM((tb, D), jnp.bfloat16),  # hi2 cache
                            pltpu.VMEM((tb, D), jnp.bfloat16)]),# ht2 cache
        compiler_params=pltpu.CompilerParams(
            dimension_semantics=("parallel", "arbitrary"),
            vmem_limit_bytes=64 * 1024 * 1024),
    )(a, imgs, texts,
      sc1i, sh1i, sc1t, sh1t,
      sc2i, sh2i, sc2t, sh2t,
      w1i, w1t, b1, w2ai, w2at, b2a, w2b, b2b)


# --------------------------------------------------------------------------
# Parameters / reference
# --------------------------------------------------------------------------
def make_params(key, embed_dim):
    """Synthetic parameters matching TIRG(fusion='base').__init__.

    Linear weights are stored transposed (in, out) = PyTorch weight.T, in
    bfloat16, and pre-split along the concat axis (img half / text half) so the
    kernel never materializes cat([imgs, texts])."""
    D = embed_dim
    C = 2 * D
    ks = jax.random.split(key, 8)
    a = jnp.array([1.0, 10.0, 1.0, 1.0], jnp.float32)
    g1 = 1.0 + 0.1 * jax.random.normal(ks[0], (1, C), jnp.float32)
    be1 = 0.1 * jax.random.normal(ks[1], (1, C), jnp.float32)
    g2 = 1.0 + 0.1 * jax.random.normal(ks[2], (1, C), jnp.float32)
    be2 = 0.1 * jax.random.normal(ks[3], (1, C), jnp.float32)
    s_c = 1.0 / jnp.sqrt(C)
    s_2d = 1.0 / jnp.sqrt(2.0 * D)
    w1 = (s_c * jax.random.normal(ks[4], (C, D), jnp.float32)).astype(jnp.bfloat16)
    b1 = jnp.zeros((1, D), jnp.float32)
    w2a = (s_c * jax.random.normal(ks[5], (C, 2 * D), jnp.float32)).astype(jnp.bfloat16)
    b2a = 0.01 * jax.random.normal(ks[6], (1, 2 * D), jnp.float32)
    w2b = (s_2d * jax.random.normal(ks[7], (2 * D, D), jnp.float32)).astype(jnp.bfloat16)
    b2b = jnp.zeros((1, D), jnp.float32)
    return (a, g1, be1, g2, be2,
            w1[:D], w1[D:], b1,
            w2a[:D], w2a[D:], b2a,
            w2b, b2b)


def tirg_reference(imgs, texts, params):
    """Pure-JAX reference of the PyTorch forward (training-mode BN), with the
    same bf16 matmul operands / f32 accumulation as the kernel."""
    if texts.ndim > 2:
        texts = jnp.squeeze(texts, axis=1)
    (a, g1, be1, g2, be2, w1i, w1t, b1, w2ai, w2at, b2a, w2b, b2b) = params
    x = jnp.concatenate([imgs, texts], axis=1).astype(jnp.float32)
    mean = jnp.mean(x, axis=0, keepdims=True)
    var = jnp.mean((x - mean) ** 2, axis=0, keepdims=True)
    xhat = (x - mean) * jax.lax.rsqrt(var + EPS)
    w1 = jnp.concatenate([w1i, w1t], axis=0)
    w2a = jnp.concatenate([w2ai, w2at], axis=0)
    h1 = jnp.maximum(xhat * g1 + be1, 0.0).astype(jnp.bfloat16)
    f1 = jnp.dot(h1, w1, preferred_element_type=jnp.float32) + b1
    h2 = jnp.maximum(xhat * g2 + be2, 0.0).astype(jnp.bfloat16)
    m = jnp.maximum(jnp.dot(h2, w2a, preferred_element_type=jnp.float32) + b2a,
                    0.0).astype(jnp.bfloat16)
    f2 = jnp.dot(m, w2b, preferred_element_type=jnp.float32) + b2b
    return jax.nn.sigmoid(f1) * imgs.astype(jnp.float32) * a[0] + f2 * a[1]


if __name__ == "__main__":
    # TODO(synk): only fusion='base' is implemented (hadamard/concat/attention
    # fusion branches of the original module are out of scope here).
    embed_dim = 128   # lane-dense feature dim (multiple of 128)
    batch = 32

    key = jax.random.PRNGKey(0)
    k_img, k_txt, k_par = jax.random.split(key, 3)
    imgs = jax.random.normal(k_img, (batch, embed_dim), jnp.float32)
    texts = jax.random.normal(k_txt, (batch, 1, embed_dim), jnp.float32)  # squeezed inside
    params = make_params(k_par, embed_dim)

    # Small explicit tiles so the (batch, K) grid has >1 step in this test.
    out = tirg_forward(imgs, texts, params, tb=16, tj=128)
    out = jax.block_until_ready(out)

    ref = tirg_reference(imgs, texts, params)
    assert out.shape == (batch, embed_dim)
    max_err = float(jnp.max(jnp.abs(out - ref)))
    assert jnp.allclose(out, ref, atol=5e-3, rtol=5e-3), \
        f"mismatch vs JAX reference, max abs err {max_err}"

    print("KERNEL_OK")
</pallas_src>

<mosaic_0001>
module attributes {stable_mosaic.version = 11 : i64} {
  func.func @bn_stats_kernel(%arg0: i32, %arg1: memref<16x128xf32, #tpu.memory_space<vmem>>, %arg2: memref<16x128xf32, #tpu.memory_space<vmem>>, %arg3: memref<1x128xf32, #tpu.memory_space<vmem>>, %arg4: memref<1x128xf32, #tpu.memory_space<vmem>>, %arg5: memref<1x128xf32, #tpu.memory_space<vmem>>, %arg6: memref<1x128xf32, #tpu.memory_space<vmem>>) attributes {dimension_semantics = [#tpu.dimension_semantics<arbitrary>], iteration_bounds = array<i64: 2>, scalar_prefetch = 0 : i64, scratch_operands = 0 : i64, tpu.core_type = #tpu.core_type<tc>, window_params = [{transform_indices = @transform_0, window_bounds = array<i64: 16, 128>}, {transform_indices = @transform_1, window_bounds = array<i64: 16, 128>}, {pipeline_mode = #tpu.pipeline_mode<synchronous>, transform_indices = @transform_2, window_bounds = array<i64: 1, 128>}, {pipeline_mode = #tpu.pipeline_mode<synchronous>, transform_indices = @transform_3, window_bounds = array<i64: 1, 128>}, {pipeline_mode = #tpu.pipeline_mode<synchronous>, transform_indices = @transform_4, window_bounds = array<i64: 1, 128>}, {pipeline_mode = #tpu.pipeline_mode<synchronous>, transform_indices = @transform_5, window_bounds = array<i64: 1, 128>}]} {
    %c0_i32 = arith.constant 0 : i32
    %0 = arith.cmpi eq, %arg0, %c0_i32 : i32
    %1 = arith.extui %0 : i1 to i32
    %c0_i32_0 = arith.constant 0 : i32
    %2 = arith.cmpi ne, %1, %c0_i32_0 : i32
    scf.if %2 {
      %cst_23 = arith.constant 0.000000e+00 : f32
      %27 = vector.broadcast %cst_23 : f32 to vector<1x128xf32>
      %c0_24 = arith.constant 0 : index
      %c0_25 = arith.constant 0 : index
      %28 = vector.load %arg3[%c0_24, %c0_25] : memref<1x128xf32, #tpu.memory_space<vmem>>, vector<1x128xf32>
      tpu.vector_store %arg3[%c0_24, %c0_25], %27 {strides = array<i32>} : memref<1x128xf32, #tpu.memory_space<vmem>>, vector<1x128xf32>,
      %cst_26 = arith.constant 0.000000e+00 : f32
      %29 = vector.broadcast %cst_26 : f32 to vector<1x128xf32>
      %c0_27 = arith.constant 0 : index
      %c0_28 = arith.constant 0 : index
      %30 = vector.load %arg4[%c0_27, %c0_28] : memref<1x128xf32, #tpu.memory_space<vmem>>, vector<1x128xf32>
      tpu.vector_store %arg4[%c0_27, %c0_28], %29 {strides = array<i32>} : memref<1x128xf32, #tpu.memory_space<vmem>>, vector<1x128xf32>,
      %cst_29 = arith.constant 0.000000e+00 : f32
      %31 = vector.broadcast %cst_29 : f32 to vector<1x128xf32>
      %c0_30 = arith.constant 0 : index
      %c0_31 = arith.constant 0 : index
      %32 = vector.load %arg5[%c0_30, %c0_31] : memref<1x128xf32, #tpu.memory_space<vmem>>, vector<1x128xf32>
      tpu.vector_store %arg5[%c0_30, %c0_31], %31 {strides = array<i32>} : memref<1x128xf32, #tpu.memory_space<vmem>>, vector<1x128xf32>,
      %cst_32 = arith.constant 0.000000e+00 : f32
      %33 = vector.broadcast %cst_32 : f32 to vector<1x128xf32>
      %c0_33 = arith.constant 0 : index
      %c0_34 = arith.constant 0 : index
      %34 = vector.load %arg6[%c0_33, %c0_34] : memref<1x128xf32, #tpu.memory_space<vmem>>, vector<1x128xf32>
      tpu.vector_store %arg6[%c0_33, %c0_34], %33 {strides = array<i32>} : memref<1x128xf32, #tpu.memory_space<vmem>>, vector<1x128xf32>,
    } else {
    }
    %c0 = arith.constant 0 : index
    %c0_1 = arith.constant 0 : index
    %3 = vector.load %arg1[%c0, %c0_1] : memref<16x128xf32, #tpu.memory_space<vmem>>, vector<16x128xf32>
    %c0_2 = arith.constant 0 : index
    %c0_3 = arith.constant 0 : index
    %4 = vector.load %arg2[%c0_2, %c0_3] : memref<16x128xf32, #tpu.memory_space<vmem>>, vector<16x128xf32>
    %c0_4 = arith.constant 0 : index
    %c0_5 = arith.constant 0 : index
    %5 = vector.load %arg3[%c0_4, %c0_5] : memref<1x128xf32, #tpu.memory_space<vmem>>, vector<1x128xf32>
    %cst = arith.constant dense<0.000000e+00> : vector<128xf32>
    %6 = vector.multi_reduction <add>, %3, %cst [0] : vector<16x128xf32> to vector<128xf32>
    %7 = vector.shape_cast %6 : vector<128xf32> to vector<1x128xf32>
    %8 = arith.addf %5, %7 : vector<1x128xf32>
    %c0_6 = arith.constant 0 : index
    %c0_7 = arith.constant 0 : index
    %9 = vector.load %arg3[%c0_6, %c0_7] : memref<1x128xf32, #tpu.memory_space<vmem>>, vector<1x128xf32>
    tpu.vector_store %arg3[%c0_6, %c0_7], %8 {strides = array<i32>} : memref<1x128xf32, #tpu.memory_space<vmem>>, vector<1x128xf32>,
    %c0_8 = arith.constant 0 : index
    %c0_9 = arith.constant 0 : index
    %10 = vector.load %arg4[%c0_8, %c0_9] : memref<1x128xf32, #tpu.memory_space<vmem>>, vector<1x128xf32>
    %11 = arith.mulf %3, %3 : vector<16x128xf32>
    %cst_10 = arith.constant dense<0.000000e+00> : vector<128xf32>
    %12 = vector.multi_reduction <add>, %11, %cst_10 [0] : vector<16x128xf32> to vector<128xf32>
    %13 = vector.shape_cast %12 : vector<128xf32> to vector<1x128xf32>
    %14 = arith.addf %10, %13 : vector<1x128xf32>
    %c0_11 = arith.constant 0 : index
    %c0_12 = arith.constant 0 : index
    %15 = vector.load %arg4[%c0_11, %c0_12] : memref<1x128xf32, #tpu.memory_space<vmem>>, vector<1x128xf32>
    tpu.vector_store %arg4[%c0_11, %c0_12], %14 {strides = array<i32>} : memref<1x128xf32, #tpu.memory_space<vmem>>, vector<1x128xf32>,
    %c0_13 = arith.constant 0 : index
    %c0_14 = arith.constant 0 : index
    %16 = vector.load %arg5[%c0_13, %c0_14] : memref<1x128xf32, #tpu.memory_space<vmem>>, vector<1x128xf32>
    %cst_15 = arith.constant dense<0.000000e+00> : vector<128xf32>
    %17 = vector.multi_reduction <add>, %4, %cst_15 [0] : vector<16x128xf32> to vector<128xf32>
    %18 = vector.shape_cast %17 : vector<128xf32> to vector<1x128xf32>
    %19 = arith.addf %16, %18 : vector<1x128xf32>
    %c0_16 = arith.constant 0 : index
    %c0_17 = arith.constant 0 : index
    %20 = vector.load %arg5[%c0_16, %c0_17] : memref<1x128xf32, #tpu.memory_space<vmem>>, vector<1x128xf32>
    tpu.vector_store %arg5[%c0_16, %c0_17], %19 {strides = array<i32>} : memref<1x128xf32, #tpu.memory_space<vmem>>, vector<1x128xf32>,
    %c0_18 = arith.constant 0 : index
    %c0_19 = arith.constant 0 : index
    %21 = vector.load %arg6[%c0_18, %c0_19] : memref<1x128xf32, #tpu.memory_space<vmem>>, vector<1x128xf32>
    %22 = arith.mulf %4, %4 : vector<16x128xf32>
    %cst_20 = arith.constant dense<0.000000e+00> : vector<128xf32>
    %23 = vector.multi_reduction <add>, %22, %cst_20 [0] : vector<16x128xf32> to vector<128xf32>
    %24 = vector.shape_cast %23 : vector<128xf32> to vector<1x128xf32>
    %25 = arith.addf %21, %24 : vector<1x128xf32>
    %c0_21 = arith.constant 0 : index
    %c0_22 = arith.constant 0 : index
    %26 = vector.load %arg6[%c0_21, %c0_22] : memref<1x128xf32, #tpu.memory_space<vmem>>, vector<1x128xf32>
    tpu.vector_store %arg6[%c0_21, %c0_22], %25 {strides = array<i32>} : memref<1x128xf32, #tpu.memory_space<vmem>>, vector<1x128xf32>,
    return
  }
  func.func @transform_0(%arg0: i32) -> (i32, i32) {
    %c0_i32 = arith.constant 0 : i32
    %c0_i32_0 = arith.constant 0 : i32
    return %arg0, %c0_i32 : i32, i32
  }
  func.func @transform_1(%arg0: i32) -> (i32, i32) {
    %c0_i32 = arith.constant 0 : i32
    %c0_i32_0 = arith.constant 0 : i32
    return %arg0, %c0_i32 : i32, i32
  }
  func.func @transform_2(%arg0: i32) -> (i32, i32) {
    %c0_i32 = arith.constant 0 : i32
    %c0_i32_0 = arith.constant 0 : i32
    %c0_i32_1 = arith.constant 0 : i32
    return %c0_i32, %c0_i32_0 : i32, i32
  }
  func.func @transform_3(%arg0: i32) -> (i32, i32) {
    %c0_i32 = arith.constant 0 : i32
    %c0_i32_0 = arith.constant 0 : i32
    %c0_i32_1 = arith.constant 0 : i32
    return %c0_i32, %c0_i32_0 : i32, i32
  }
  func.func @transform_4(%arg0: i32) -> (i32, i32) {
    %c0_i32 = arith.constant 0 : i32
    %c0_i32_0 = arith.constant 0 : i32
    %c0_i32_1 = arith.constant 0 : i32
    return %c0_i32, %c0_i32_0 : i32, i32
  }
  func.func @transform_5(%arg0: i32) -> (i32, i32) {
    %c0_i32 = arith.constant 0 : i32
    %c0_i32_0 = arith.constant 0 : i32
    %c0_i32_1 = arith.constant 0 : i32
    return %c0_i32, %c0_i32_0 : i32, i32
  }
}

module attributes {stable_mosaic.version = 11 : i64} {
  func.func @tirg_fused_kernel(%arg0: i32, %arg1: i32, %arg2: memref<4xf32, #tpu.memory_space<smem>>, %arg3: memref<16x128xf32, #tpu.memory_space<vmem>>, %arg4: memref<16x128xf32, #tpu.memory_space<vmem>>, %arg5: memref<1x128xf32, #tpu.memory_space<vmem>>, %arg6: memref<1x128xf32, #tpu.memory_space<vmem>>, %arg7: memref<1x128xf32, #tpu.memory_space<vmem>>, %arg8: memref<1x128xf32, #tpu.memory_space<vmem>>, %arg9: memref<1x128xf32, #tpu.memory_space<vmem>>, %arg10: memref<1x128xf32, #tpu.memory_space<vmem>>, %arg11: memref<1x128xf32, #tpu.memory_space<vmem>>, %arg12: memref<1x128xf32, #tpu.memory_space<vmem>>, %arg13: memref<128x128xbf16, #tpu.memory_space<vmem>>, %arg14: memref<128x128xbf16, #tpu.memory_space<vmem>>, %arg15: memref<1x128xf32, #tpu.memory_space<vmem>>, %arg16: memref<128x128xbf16, #tpu.memory_space<vmem>>, %arg17: memref<128x128xbf16, #tpu.memory_space<vmem>>, %arg18: memref<1x128xf32, #tpu.memory_space<vmem>>, %arg19: memref<128x128xbf16, #tpu.memory_space<vmem>>, %arg20: memref<1x128xf32, #tpu.memory_space<vmem>>, %arg21: memref<16x128xf32, #tpu.memory_space<vmem>>, %arg22: memref<16x128xf32, #tpu.memory_space<vmem>>, %arg23: memref<16x128xf32, #tpu.memory_space<vmem>>, %arg24: memref<16x128xbf16, #tpu.memory_space<vmem>>, %arg25: memref<16x128xbf16, #tpu.memory_space<vmem>>) attributes {dimension_semantics = [#tpu.dimension_semantics<parallel>, #tpu.dimension_semantics<arbitrary>], iteration_bounds = array<i64: 2, 2>, scalar_prefetch = 0 : i64, scratch_operands = 4 : i64, tpu.core_type = #tpu.core_type<tc>, window_params = [{transform_indices = @transform_0, window_bounds = array<i64: 4>}, {transform_indices = @transform_1, window_bounds = array<i64: 16, 128>}, {transform_indices = @transform_2, window_bounds = array<i64: 16, 128>}, {pipeline_mode = #tpu.pipeline_mode<synchronous>, transform_indices = @transform_3, window_bounds = array<i64: 1, 128>}, {pipeline_mode = #tpu.pipeline_mode<synchronous>, transform_indices = @transform_4, window_bounds = array<i64: 1, 128>}, {pipeline_mode = #tpu.pipeline_mode<synchronous>, transform_indices = @transform_5, window_bounds = array<i64: 1, 128>}, {pipeline_mode = #tpu.pipeline_mode<synchronous>, transform_indices = @transform_6, window_bounds = array<i64: 1, 128>}, {pipeline_mode = #tpu.pipeline_mode<synchronous>, transform_indices = @transform_7, window_bounds = array<i64: 1, 128>}, {pipeline_mode = #tpu.pipeline_mode<synchronous>, transform_indices = @transform_8, window_bounds = array<i64: 1, 128>}, {pipeline_mode = #tpu.pipeline_mode<synchronous>, transform_indices = @transform_9, window_bounds = array<i64: 1, 128>}, {pipeline_mode = #tpu.pipeline_mode<synchronous>, transform_indices = @transform_10, window_bounds = array<i64: 1, 128>}, {pipeline_mode = #tpu.pipeline_mode<synchronous>, transform_indices = @transform_11, window_bounds = array<i64: 128, 128>}, {pipeline_mode = #tpu.pipeline_mode<synchronous>, transform_indices = @transform_12, window_bounds = array<i64: 128, 128>}, {pipeline_mode = #tpu.pipeline_mode<synchronous>, transform_indices = @transform_13, window_bounds = array<i64: 1, 128>}, {transform_indices = @transform_14, window_bounds = array<i64: 128, 128>}, {transform_indices = @transform_15, window_bounds = array<i64: 128, 128>}, {transform_indices = @transform_16, window_bounds = array<i64: 1, 128>}, {transform_indices = @transform_17, window_bounds = array<i64: 128, 128>}, {pipeline_mode = #tpu.pipeline_mode<synchronous>, transform_indices = @transform_18, window_bounds = array<i64: 1, 128>}, {transform_indices = @transform_19, window_bounds = array<i64: 16, 128>}]} {
    %c0_i32 = arith.constant 0 : i32
    %0 = arith.cmpi eq, %arg1, %c0_i32 : i32
    %1 = arith.extui %0 : i1 to i32
    %c0_i32_0 = arith.constant 0 : i32
    %2 = arith.cmpi ne, %1, %c0_i32_0 : i32
    scf.if %2 {
      %c0_20 = arith.constant 0 : index
      %c0_21 = arith.constant 0 : index
      %24 = vector.load %arg3[%c0_20, %c0_21] : memref<16x128xf32, #tpu.memory_space<vmem>>, vector<16x128xf32>
      %c0_22 = arith.constant 0 : index
      %c0_23 = arith.constant 0 : index
      %25 = vector.load %arg4[%c0_22, %c0_23] : memref<16x128xf32, #tpu.memory_space<vmem>>, vector<16x128xf32>
      %c0_24 = arith.constant 0 : index
      %c0_25 = arith.constant 0 : index
      %26 = vector.load %arg5[%c0_24, %c0_25] : memref<1x128xf32, #tpu.memory_space<vmem>>, vector<1x128xf32>
      %27 = vector.broadcast %26 : vector<1x128xf32> to vector<16x128xf32>
      %28 = arith.mulf %24, %27 : vector<16x128xf32>
      %c0_26 = arith.constant 0 : index
      %c0_27 = arith.constant 0 : index
      %29 = vector.load %arg6[%c0_26, %c0_27] : memref<1x128xf32, #tpu.memory_space<vmem>>, vector<1x128xf32>
      %30 = vector.broadcast %29 : vector<1x128xf32> to vector<16x128xf32>
      %31 = arith.addf %28, %30 : vector<16x128xf32>
      %cst_28 = arith.constant 0.000000e+00 : f32
      %32 = vector.broadcast %cst_28 : f32 to vector<16x128xf32>
      %33 = arith.maximumf %31, %32 : vector<16x128xf32>
      %34 = arith.truncf %33 : vector<16x128xf32> to vector<16x128xbf16>
      %c0_29 = arith.constant 0 : index
      %c0_30 = arith.constant 0 : index
      %35 = vector.load %arg7[%c0_29, %c0_30] : memref<1x128xf32, #tpu.memory_space<vmem>>, vector<1x128xf32>
      %36 = vector.broadcast %35 : vector<1x128xf32> to vector<16x128xf32>
      %37 = arith.mulf %25, %36 : vector<16x128xf32>
      %c0_31 = arith.constant 0 : index
      %c0_32 = arith.constant 0 : index
      %38 = vector.load %arg8[%c0_31, %c0_32] : memref<1x128xf32, #tpu.memory_space<vmem>>, vector<1x128xf32>
      %39 = vector.broadcast %38 : vector<1x128xf32> to vector<16x128xf32>
      %40 = arith.addf %37, %39 : vector<16x128xf32>
      %cst_33 = arith.constant 0.000000e+00 : f32
      %41 = vector.broadcast %cst_33 : f32 to vector<16x128xf32>
      %42 = arith.maximumf %40, %41 : vector<16x128xf32>
      %43 = arith.truncf %42 : vector<16x128xf32> to vector<16x128xbf16>
      %c0_34 = arith.constant 0 : index
      %c0_35 = arith.constant 0 : index
      %44 = vector.load %arg13[%c0_34, %c0_35] : memref<128x128xbf16, #tpu.memory_space<vmem>>, vector<128x128xbf16>
      %cst_36 = arith.constant dense<0.000000e+00> : vector<16x128xf32>
      %45 = tpu.matmul %34, %44, %cst_36 {dimension_numbers = #tpu.dot_dimension_numbers<[1], [0], [0], [1], [0, 0, 1, 1], [], []>} : vector<16x128xbf16>, vector<128x128xbf16>, vector<16x128xf32> -> vector<16x128xf32>
      %c0_37 = arith.constant 0 : index
      %c0_38 = arith.constant 0 : index
      %46 = vector.load %arg14[%c0_37, %c0_38] : memref<128x128xbf16, #tpu.memory_space<vmem>>, vector<128x128xbf16>
      %cst_39 = arith.constant dense<0.000000e+00> : vector<16x128xf32>
      %47 = tpu.matmul %43, %46, %cst_39 {dimension_numbers = #tpu.dot_dimension_numbers<[1], [0], [0], [1], [0, 0, 1, 1], [], []>} : vector<16x128xbf16>, vector<128x128xbf16>, vector<16x128xf32> -> vector<16x128xf32>
      %48 = arith.addf %45, %47 : vector<16x128xf32>
      %c0_40 = arith.constant 0 : index
      %c0_41 = arith.constant 0 : index
      %49 = vector.load %arg15[%c0_40, %c0_41] : memref<1x128xf32, #tpu.memory_space<vmem>>, vector<1x128xf32>
      %50 = vector.broadcast %49 : vector<1x128xf32> to vector<16x128xf32>
      %51 = arith.addf %48, %50 : vector<16x128xf32>
      %c0_42 = arith.constant 0 : index
      %c0_43 = arith.constant 0 : index
      %52 = vector.load %arg22[%c0_42, %c0_43] : memref<16x128xf32, #tpu.memory_space<vmem>>, vector<16x128xf32>
      tpu.vector_store %arg22[%c0_42, %c0_43], %51 {strides = array<i32>} : memref<16x128xf32, #tpu.memory_space<vmem>>, vector<16x128xf32>,
      %cst_44 = arith.constant 0.000000e+00 : f32
      %53 = vector.broadcast %cst_44 : f32 to vector<16x128xf32>
      %c0_45 = arith.constant 0 : index
      %c0_46 = arith.constant 0 : index
      %54 = vector.load %arg23[%c0_45, %c0_46] : memref<16x128xf32, #tpu.memory_space<vmem>>, vector<16x128xf32>
      tpu.vector_store %arg23[%c0_45, %c0_46], %53 {strides = array<i32>} : memref<16x128xf32, #tpu.memory_space<vmem>>, vector<16x128xf32>,
      %c0_47 = arith.constant 0 : index
      %c0_48 = arith.constant 0 : index
      %55 = vector.load %arg9[%c0_47, %c0_48] : memref<1x128xf32, #tpu.memory_space<vmem>>, vector<1x128xf32>
      %56 = vector.broadcast %55 : vector<1x128xf32> to vector<16x128xf32>
      %57 = arith.mulf %24, %56 : vector<16x128xf32>
      %c0_49 = arith.constant 0 : index
      %c0_50 = arith.constant 0 : index
      %58 = vector.load %arg10[%c0_49, %c0_50] : memref<1x128xf32, #tpu.memory_space<vmem>>, vector<1x128xf32>
      %59 = vector.broadcast %58 : vector<1x128xf32> to vector<16x128xf32>
      %60 = arith.addf %57, %59 : vector<16x128xf32>
      %cst_51 = arith.constant 0.000000e+00 : f32
      %61 = vector.broadcast %cst_51 : f32 to vector<16x128xf32>
      %62 = arith.maximumf %60, %61 : vector<16x128xf32>
      %63 = arith.truncf %62 : vector<16x128xf32> to vector<16x128xbf16>
      %c0_52 = arith.constant 0 : index
      %c0_53 = arith.constant 0 : index
      %64 = vector.load %arg24[%c0_52, %c0_53] : memref<16x128xbf16, #tpu.memory_space<vmem>>, vector<16x128xbf16>
      tpu.vector_store %arg24[%c0_52, %c0_53], %63 {strides = array<i32>} : memref<16x128xbf16, #tpu.memory_space<vmem>>, vector<16x128xbf16>,
      %c0_54 = arith.constant 0 : index
      %c0_55 = arith.constant 0 : index
      %65 = vector.load %arg11[%c0_54, %c0_55] : memref<1x128xf32, #tpu.memory_space<vmem>>, vector<1x128xf32>
      %66 = vector.broadcast %65 : vector<1x128xf32> to vector<16x128xf32>
      %67 = arith.mulf %25, %66 : vector<16x128xf32>
      %c0_56 = arith.constant 0 : index
      %c0_57 = arith.constant 0 : index
      %68 = vector.load %arg12[%c0_56, %c0_57] : memref<1x128xf32, #tpu.memory_space<vmem>>, vector<1x128xf32>
      %69 = vector.broadcast %68 : vector<1x128xf32> to vector<16x128xf32>
      %70 = arith.addf %67, %69 : vector<16x128xf32>
      %cst_58 = arith.constant 0.000000e+00 : f32
      %71 = vector.broadcast %cst_58 : f32 to vector<16x128xf32>
      %72 = arith.maximumf %70, %71 : vector<16x128xf32>
      %73 = arith.truncf %72 : vector<16x128xf32> to vector<16x128xbf16>
      %c0_59 = arith.constant 0 : index
      %c0_60 = arith.constant 0 : index
      %74 = vector.load %arg25[%c0_59, %c0_60] : memref<16x128xbf16, #tpu.memory_space<vmem>>, vector<16x128xbf16>
      tpu.vector_store %arg25[%c0_59, %c0_60], %73 {strides = array<i32>} : memref<16x128xbf16, #tpu.memory_space<vmem>>, vector<16x128xbf16>,
    } else {
    }
    %c0 = arith.constant 0 : index
    %c0_1 = arith.constant 0 : index
    %3 = vector.load %arg24[%c0, %c0_1] : memref<16x128xbf16, #tpu.memory_space<vmem>>, vector<16x128xbf16>
    %c0_2 = arith.constant 0 : index
    %c0_3 = arith.constant 0 : index
    %4 = vector.load %arg16[%c0_2, %c0_3] : memref<128x128xbf16, #tpu.memory_space<vmem>>, vector<128x128xbf16>
    %cst = arith.constant dense<0.000000e+00> : vector<16x128xf32>
    %5 = tpu.matmul %3, %4, %cst {dimension_numbers = #tpu.dot_dimension_numbers<[1], [0], [0], [1], [0, 0, 1, 1], [], []>} : vector<16x128xbf16>, vector<128x128xbf16>, vector<16x128xf32> -> vector<16x128xf32>
    %c0_4 = arith.constant 0 : index
    %c0_5 = arith.constant 0 : index
    %6 = vector.load %arg25[%c0_4, %c0_5] : memref<16x128xbf16, #tpu.memory_space<vmem>>, vector<16x128xbf16>
    %c0_6 = arith.constant 0 : index
    %c0_7 = arith.constant 0 : index
    %7 = vector.load %arg17[%c0_6, %c0_7] : memref<128x128xbf16, #tpu.memory_space<vmem>>, vector<128x128xbf16>
    %cst_8 = arith.constant dense<0.000000e+00> : vector<16x128xf32>
    %8 = tpu.matmul %6, %7, %cst_8 {dimension_numbers = #tpu.dot_dimension_numbers<[1], [0], [0], [1], [0, 0, 1, 1], [], []>} : vector<16x128xbf16>, vector<128x128xbf16>, vector<16x128xf32> -> vector<16x128xf32>
    %9 = arith.addf %5, %8 : vector<16x128xf32>
    %c0_9 = arith.constant 0 : index
    %c0_10 = arith.constant 0 : index
    %10 = vector.load %arg18[%c0_9, %c0_10] : memref<1x128xf32, #tpu.memory_space<vmem>>, vector<1x128xf32>
    %11 = vector.broadcast %10 : vector<1x128xf32> to vector<16x128xf32>
    %12 = arith.addf %9, %11 : vector<16x128xf32>
    %cst_11 = arith.constant 0.000000e+00 : f32
    %13 = vector.broadcast %cst_11 : f32 to vector<16x128xf32>
    %14 = arith.maximumf %12, %13 : vector<16x128xf32>
    %15 = arith.truncf %14 : vector<16x128xf32> to vector<16x128xbf16>
    %c0_12 = arith.constant 0 : index
    %c0_13 = arith.constant 0 : index
    %16 = vector.load %arg23[%c0_12, %c0_13] : memref<16x128xf32, #tpu.memory_space<vmem>>, vector<16x128xf32>
    %c0_14 = arith.constant 0 : index
    %c0_15 = arith.constant 0 : index
    %17 = vector.load %arg19[%c0_14, %c0_15] : memref<128x128xbf16, #tpu.memory_space<vmem>>, vector<128x128xbf16>
    %cst_16 = arith.constant dense<0.000000e+00> : vector<16x128xf32>
    %18 = tpu.matmul %15, %17, %cst_16 {dimension_numbers = #tpu.dot_dimension_numbers<[1], [0], [0], [1], [0, 0, 1, 1], [], []>} : vector<16x128xbf16>, vector<128x128xbf16>, vector<16x128xf32> -> vector<16x128xf32>
    %19 = arith.addf %16, %18 : vector<16x128xf32>
    %c0_17 = arith.constant 0 : index
    %c0_18 = arith.constant 0 : index
    %20 = vector.load %arg23[%c0_17, %c0_18] : memref<16x128xf32, #tpu.memory_space<vmem>>, vector<16x128xf32>
    tpu.vector_store %arg23[%c0_17, %c0_18], %19 {strides = array<i32>} : memref<16x128xf32, #tpu.memory_space<vmem>>, vector<16x128xf32>,
    %c1_i32 = arith.constant 1 : i32
    %21 = arith.cmpi eq, %arg1, %c1_i32 : i32
    %22 = arith.extui %21 : i1 to i32
    %c0_i32_19 = arith.constant 0 : i32
    %23 = arith.cmpi ne, %22, %c0_i32_19 : i32
    scf.if %23 {
      %c0_20 = arith.constant 0 : index
      %24 = memref.load %arg2[%c0_20] : memref<4xf32, #tpu.memory_space<smem>>
      %c1 = arith.constant 1 : index
      %25 = memref.load %arg2[%c1] : memref<4xf32, #tpu.memory_space<smem>>
      %c0_21 = arith.constant 0 : index
      %c0_22 = arith.constant 0 : index
      %26 = vector.load %arg3[%c0_21, %c0_22] : memref<16x128xf32, #tpu.memory_space<vmem>>, vector<16x128xf32>
      %c0_23 = arith.constant 0 : index
      %c0_24 = arith.constant 0 : index
      %27 = vector.load %arg23[%c0_23, %c0_24] : memref<16x128xf32, #tpu.memory_space<vmem>>, vector<16x128xf32>
      %c0_25 = arith.constant 0 : index
      %c0_26 = arith.constant 0 : index
      %28 = vector.load %arg20[%c0_25, %c0_26] : memref<1x128xf32, #tpu.memory_space<vmem>>, vector<1x128xf32>
      %29 = vector.broadcast %28 : vector<1x128xf32> to vector<16x128xf32>
      %30 = arith.addf %27, %29 : vector<16x128xf32>
      %c0_27 = arith.constant 0 : index
      %c0_28 = arith.constant 0 : index
      %31 = vector.load %arg22[%c0_27, %c0_28] : memref<16x128xf32, #tpu.memory_space<vmem>>, vector<16x128xf32>
      %32 = arith.negf %31 : vector<16x128xf32>
      %33 = math.exp %32 : vector<16x128xf32>
      %cst_29 = arith.constant 1.000000e+00 : f32
      %34 = vector.broadcast %cst_29 : f32 to vector<16x128xf32>
      %35 = arith.addf %34, %33 : vector<16x128xf32>
      %36 = arith.divf %34, %35 : vector<16x128xf32>
      %37 = arith.mulf %36, %26 : vector<16x128xf32>
      %38 = vector.broadcast %24 : f32 to vector<16x128xf32>
      %39 = arith.mulf %37, %38 : vector<16x128xf32>
      %40 = vector.broadcast %25 : f32 to vector<16x128xf32>
      %41 = arith.mulf %30, %40 : vector<16x128xf32>
      %42 = arith.addf %39, %41 : vector<16x128xf32>
      %c0_30 = arith.constant 0 : index
      %c0_31 = arith.constant 0 : index
      %43 = vector.load %arg21[%c0_30, %c0_31] : memref<16x128xf32, #tpu.memory_space<vmem>>, vector<16x128xf32>
      tpu.vector_store %arg21[%c0_30, %c0_31], %42 {strides = array<i32>} : memref<16x128xf32, #tpu.memory_space<vmem>>, vector<16x128xf32>,
    } else {
    }
    return
  }
  func.func @transform_0(%arg0: i32, %arg1: i32) -> i32 {
    %c0_i32 = arith.constant 0 : i32
    %c0_i32_0 = arith.constant 0 : i32
    return %c0_i32 : i32
  }
  func.func @transform_1(%arg0: i32, %arg1: i32) -> (i32, i32) {
    %c0_i32 = arith.constant 0 : i32
    %c0_i32_0 = arith.constant 0 : i32
    return %arg0, %c0_i32 : i32, i32
  }
  func.func @transform_2(%arg0: i32, %arg1: i32) -> (i32, i32) {
    %c0_i32 = arith.constant 0 : i32
    %c0_i32_0 = arith.constant 0 : i32
    return %arg0, %c0_i32 : i32, i32
  }
  func.func @transform_3(%arg0: i32, %arg1: i32) -> (i32, i32) {
    %c0_i32 = arith.constant 0 : i32
    %c0_i32_0 = arith.constant 0 : i32
    %c0_i32_1 = arith.constant 0 : i32
    return %c0_i32, %c0_i32_0 : i32, i32
  }
  func.func @transform_4(%arg0: i32, %arg1: i32) -> (i32, i32) {
    %c0_i32 = arith.constant 0 : i32
    %c0_i32_0 = arith.constant 0 : i32
    %c0_i32_1 = arith.constant 0 : i32
    return %c0_i32, %c0_i32_0 : i32, i32
  }
  func.func @transform_5(%arg0: i32, %arg1: i32) -> (i32, i32) {
    %c0_i32 = arith.constant 0 : i32
    %c0_i32_0 = arith.constant 0 : i32
    %c0_i32_1 = arith.constant 0 : i32
    return %c0_i32, %c0_i32_0 : i32, i32
  }
  func.func @transform_6(%arg0: i32, %arg1: i32) -> (i32, i32) {
    %c0_i32 = arith.constant 0 : i32
    %c0_i32_0 = arith.constant 0 : i32
    %c0_i32_1 = arith.constant 0 : i32
    return %c0_i32, %c0_i32_0 : i32, i32
  }
  func.func @transform_7(%arg0: i32, %arg1: i32) -> (i32, i32) {
    %c0_i32 = arith.constant 0 : i32
    %c0_i32_0 = arith.constant 0 : i32
    %c0_i32_1 = arith.constant 0 : i32
    return %c0_i32, %c0_i32_0 : i32, i32
  }
  func.func @transform_8(%arg0: i32, %arg1: i32) -> (i32, i32) {
    %c0_i32 = arith.constant 0 : i32
    %c0_i32_0 = arith.constant 0 : i32
    %c0_i32_1 = arith.constant 0 : i32
    return %c0_i32, %c0_i32_0 : i32, i32
  }
  func.func @transform_9(%arg0: i32, %arg1: i32) -> (i32, i32) {
    %c0_i32 = arith.constant 0 : i32
    %c0_i32_0 = arith.constant 0 : i32
    %c0_i32_1 = arith.constant 0 : i32
    return %c0_i32, %c0_i32_0 : i32, i32
  }
  func.func @transform_10(%arg0: i32, %arg1: i32) -> (i32, i32) {
    %c0_i32 = arith.constant 0 : i32
    %c0_i32_0 = arith.constant 0 : i32
    %c0_i32_1 = arith.constant 0 : i32
    return %c0_i32, %c0_i32_0 : i32, i32
  }
  func.func @transform_11(%arg0: i32, %arg1: i32) -> (i32, i32) {
    %c0_i32 = arith.constant 0 : i32
    %c0_i32_0 = arith.constant 0 : i32
    %c0_i32_1 = arith.constant 0 : i32
    return %c0_i32, %c0_i32_0 : i32, i32
  }
  func.func @transform_12(%arg0: i32, %arg1: i32) -> (i32, i32) {
    %c0_i32 = arith.constant 0 : i32
    %c0_i32_0 = arith.constant 0 : i32
    %c0_i32_1 = arith.constant 0 : i32
    return %c0_i32, %c0_i32_0 : i32, i32
  }
  func.func @transform_13(%arg0: i32, %arg1: i32) -> (i32, i32) {
    %c0_i32 = arith.constant 0 : i32
    %c0_i32_0 = arith.constant 0 : i32
    %c0_i32_1 = arith.constant 0 : i32
    return %c0_i32, %c0_i32_0 : i32, i32
  }
  func.func @transform_14(%arg0: i32, %arg1: i32) -> (i32, i32) {
    %c0_i32 = arith.constant 0 : i32
    %c0_i32_0 = arith.constant 0 : i32
    return %c0_i32, %arg1 : i32, i32
  }
  func.func @transform_15(%arg0: i32, %arg1: i32) -> (i32, i32) {
    %c0_i32 = arith.constant 0 : i32
    %c0_i32_0 = arith.constant 0 : i32
    return %c0_i32, %arg1 : i32, i32
  }
  func.func @transform_16(%arg0: i32, %arg1: i32) -> (i32, i32) {
    %c0_i32 = arith.constant 0 : i32
    %c0_i32_0 = arith.constant 0 : i32
    return %c0_i32, %arg1 : i32, i32
  }
  func.func @transform_17(%arg0: i32, %arg1: i32) -> (i32, i32) {
    %c0_i32 = arith.constant 0 : i32
    %c0_i32_0 = arith.constant 0 : i32
    return %arg1, %c0_i32 : i32, i32
  }
  func.func @transform_18(%arg0: i32, %arg1: i32) -> (i32, i32) {
    %c0_i32 = arith.constant 0 : i32
    %c0_i32_0 = arith.constant 0 : i32
    %c0_i32_1 = arith.constant 0 : i32
    return %c0_i32, %c0_i32_0 : i32, i32
  }
  func.func @transform_19(%arg0: i32, %arg1: i32) -> (i32, i32) {
    %c0_i32 = arith.constant 0 : i32
    %c0_i32_0 = arith.constant 0 : i32
    return %arg0, %c0_i32 : i32, i32
  }
}

</mosaic_0001>

<llo_original>
// kernel: tirg_forward.2
$region0: #{tirg_forward.2}
  #allocation0 [shape = 'u32[]', space=smem, size = 0x4, offset = 0x4, fixed_abs, tag = 'smem constant byte address 0x4 - core index']
  #allocation1 [shape = 'u32[144,128]{1,0:T(1,128)}', space=vmem, size = 0x12000, scoped, tag = 'internal scratch']
  %s0 = inlined_call_operand.hbm [shape: f32[32,128], index: 0, kind: input, shape index: {}]
  %s1 = inlined_call_operand.hbm [shape: f32[32,128], index: 1, kind: input, shape index: {}]
  %s2 = inlined_call_operand.vmem [shape: f32[1,128], index: 2, kind: output, shape index: {0}]
  %s3 = inlined_call_operand.vmem [shape: f32[1,128], index: 3, kind: output, shape index: {1}]
  %s4 = inlined_call_operand.vmem [shape: f32[1,128], index: 4, kind: output, shape index: {2}]
  %s5 = inlined_call_operand.vmem [shape: f32[1,128], index: 5, kind: output, shape index: {3}]
  %6 = xla_tuple %s2, %s3, %s4, %s5
  %s7 = sld [smem:[#allocation0]]
  $region77: #{tirg_forward.2} parent=0
    _
  %s9 = ssub.s32 1, %s7
  %s10 = scalar_select 0, %s9, %s7
  $region1: #{tirg_forward.2} parent=0
    #allocation2 [shape = 'u8[16384]{0}', space=vmem, size = 0x4000, scoped, tag = 'input window, operand 0']
    #allocation3 [shape = 's32[2]{0}', space=sflag, size = 0x8, scoped, tag = 'scoped memory for tirg_forward.2']
    #allocation4 [shape = 'u8[16384]{0}', space=vmem, size = 0x4000, scoped, tag = 'input window, operand 1']
    #allocation5 [shape = 's32[2]{0}', space=sflag, size = 0x8, scoped, tag = 'scoped memory for tirg_forward.2']
    %11 = vsyncpa [#allocation3], 0
    %s12 = scalar_lea.sflag [#allocation3], 1
    %13 = vsyncpa %s12, 0
    %14 = vsyncpa [#allocation5], 0
    %s15 = scalar_lea.sflag [#allocation5], 1
    %16 = vsyncpa %s15, 0
    loop: start=0, step=1, limit=4
    $region2: #{tirg_forward.2} parent=1 // loop_pre_header
      _
    $region3: #{tirg_forward.2} parent=1 // loop_header
      %s18 = sphi 0, %s22
      %p19 = scmp.ge.s32.totalorder %s18, 4
      %s28 = sphi 0, %s30
      %s31 = sphi 0, %s28
      %s32 = sphi 0, %s31
      %s48 = sphi 0, %s32
      %s54 = sphi 0, %s56
      %s57 = sphi 0, %s54
      %s58 = sphi 0, %s57
      %s74 = sphi 0, %s58
      %s78 = sphi 0, %s78
      %s80 = sphi 0, %s78
      %s81 = sphi 0, %s80
      %s95 = sphi 0, %s81
      %s99 = sphi 0, %s99
      %s101 = sphi 0, %s99
      %s102 = sphi 0, %s101
      %s116 = sphi 0, %s102
      %s120 = sphi 0, %s120
      %s122 = sphi 0, %s120
      %s123 = sphi 0, %s122
      %s137 = sphi 0, %s123
      %s141 = sphi 0, %s141
      %s143 = sphi 0, %s141
      %s144 = sphi 0, %s143
      %s158 = sphi 0, %s144
    $region4: #{tirg_forward.2} parent=1 // loop_header_branch
      %21 = sbr.rel (%p19) target = $region8
    $region5: #{tirg_forward.2} parent=1 // loop_body
      %s23 = ssub.s32 %s18, 1
      %s24 = ssub.s32 %s18, 2
      %s25 = sadd.s32 %s18, 1
      %s26 = ssub.s32 %s18, %s25
      %p27 = scmp.eq.s32.totalorder %s26, 0
      %s29 = sadd.s32 %s28, 1
      %s30 = scalar_select %p27, %s28, %s29
      %p33 = pneg %p27
      %p34 = scmp.eq.s32.totalorder %s18, 1
      %p35 = por %p33, %p34
      %p36 = scmp.ne.s32.totalorder %s28, %s31
      %p37 = scmp.eq.s32.totalorder %s18, 0
      %p38 = por %p36, %p37
      %p39 = scmp.ne.s32.totalorder %s28, %s31
      %p40 = scmp.eq.s32.totalorder %s23, 1
      %p41 = por %p39, %p40
      %p42 = scmp.ne.s32.totalorder %s31, %s32
      %p43 = scmp.eq.s32.totalorder %s23, 0
      %p44 = por %p42, %p43
      %p45 = scmp.ne.s32.totalorder %s31, %s32
      %p46 = scmp.eq.s32.totalorder %s24, 1
      %p47 = por %p45, %p46
      %p49 = scmp.ne.s32.totalorder %s32, %s48
      %p50 = scmp.eq.s32.totalorder %s24, 0
      %p51 = por %p49, %p50
      %s52 = ssub.s32 %s18, %s25
      %p53 = scmp.eq.s32.totalorder %s52, 0
      %s55 = sadd.s32 %s54, 1
      %s56 = scalar_select %p53, %s54, %s55
      %p59 = pneg %p53
      %p60 = scmp.eq.s32.totalorder %s18, 1
      %p61 = por %p59, %p60
      %p62 = scmp.ne.s32.totalorder %s54, %s57
      %p63 = scmp.eq.s32.totalorder %s18, 0
      %p64 = por %p62, %p63
      %p65 = scmp.ne.s32.totalorder %s54, %s57
      %p66 = scmp.eq.s32.totalorder %s23, 1
      %p67 = por %p65, %p66
      %p68 = scmp.ne.s32.totalorder %s57, %s58
      %p69 = scmp.eq.s32.totalorder %s23, 0
      %p70 = por %p68, %p69
      %p71 = scmp.ne.s32.totalorder %s57, %s58
      %p72 = scmp.eq.s32.totalorder %s24, 1
      %p73 = por %p71, %p72
      %p75 = scmp.ne.s32.totalorder %s58, %s74
      %p76 = scmp.eq.s32.totalorder %s24, 0
      %p77 = por %p75, %p76
      %s79 = sadd.s32 %s78, 1
      %p82 = scmp.eq.s32.totalorder %s18, 1
      %p83 = scmp.ne.s32.totalorder %s78, %s80
      %p84 = scmp.eq.s32.totalorder %s18, 0
      %p85 = por %p83, %p84
      %p86 = scmp.ne.s32.totalorder %s78, %s80
      %p87 = scmp.eq.s32.totalorder %s23, 1
      %p88 = por %p86, %p87
      %p89 = scmp.ne.s32.totalorder %s80, %s81
      %p90 = scmp.eq.s32.totalorder %s23, 0
      %p91 = por %p89, %p90
      %p92 = scmp.ne.s32.totalorder %s80, %s81
      %p93 = scmp.eq.s32.totalorder %s24, 1
      %p94 = por %p92, %p93
      %p96 = scmp.ne.s32.totalorder %s81, %s95
      %p97 = scmp.eq.s32.totalorder %s24, 0
      %p98 = por %p96, %p97
      %s100 = sadd.s32 %s99, 1
      %p103 = scmp.eq.s32.totalorder %s18, 1
      %p104 = scmp.ne.s32.totalorder %s99, %s101
      %p105 = scmp.eq.s32.totalorder %s18, 0
      %p106 = por %p104, %p105
      %p107 = scmp.ne.s32.totalorder %s99, %s101
      %p108 = scmp.eq.s32.totalorder %s23, 1
      %p109 = por %p107, %p108
      %p110 = scmp.ne.s32.totalorder %s101, %s102
      %p111 = scmp.eq.s32.totalorder %s23, 0
      %p112 = por %p110, %p111
      %p113 = scmp.ne.s32.totalorder %s101, %s102
      %p114 = scmp.eq.s32.totalorder %s24, 1
      %p115 = por %p113, %p114
      %p117 = scmp.ne.s32.totalorder %s102, %s116
      %p118 = scmp.eq.s32.totalorder %s24, 0
      %p119 = por %p117, %p118
      %s121 = sadd.s32 %s120, 1
      %p124 = scmp.eq.s32.totalorder %s18, 1
      %p125 = scmp.ne.s32.totalorder %s120, %s122
      %p126 = scmp.eq.s32.totalorder %s18, 0
      %p127 = por %p125, %p126
      %p128 = scmp.ne.s32.totalorder %s120, %s122
      %p129 = scmp.eq.s32.totalorder %s23, 1
      %p130 = por %p128, %p129
      %p131 = scmp.ne.s32.totalorder %s122, %s123
      %p132 = scmp.eq.s32.totalorder %s23, 0
      %p133 = por %p131, %p132
      %p134 = scmp.ne.s32.totalorder %s122, %s123
      %p135 = scmp.eq.s32.totalorder %s24, 1
      %p136 = por %p134, %p135
      %p138 = scmp.ne.s32.totalorder %s123, %s137
      %p139 = scmp.eq.s32.totalorder %s24, 0
      %p140 = por %p138, %p139
      %s142 = sadd.s32 %s141, 1
      %p145 = scmp.eq.s32.totalorder %s18, 1
      %p146 = scmp.ne.s32.totalorder %s141, %s143
      %p147 = scmp.eq.s32.totalorder %s18, 0
      %p148 = por %p146, %p147
      %p149 = scmp.ne.s32.totalorder %s141, %s143
      %p150 = scmp.eq.s32.totalorder %s23, 1
      %p151 = por %p149, %p150
      %p152 = scmp.ne.s32.totalorder %s143, %s144
      %p153 = scmp.eq.s32.totalorder %s23, 0
      %p154 = por %p152, %p153
      %p155 = scmp.ne.s32.totalorder %s143, %s144
      %p156 = scmp.eq.s32.totalorder %s24, 1
      %p157 = por %p155, %p156
      %p159 = scmp.ne.s32.totalorder %s144, %s158
      %p160 = scmp.eq.s32.totalorder %s24, 0
      %p161 = por %p159, %p160
      %p162 = scmp.le.s32.totalorder 1, %s18
      %p163 = scmp.lt.s32.totalorder %s18, 3
      %p164 = pnand %p162, %p163
      %p165 = pneg %p164
      // Predicated region
      $region9: #{tirg_forward.2} parent=5 // pred_check
        _
      $region10: #{tirg_forward.2} parent=5 // pred_check_branch
        %167 = sbr.rel (%p164) target = $region12
      $region11: #{tirg_forward.2} parent=5 // pred_region
        %s168 = ssub.s32 %s18, 1
      $region12: #{tirg_forward.2} parent=5 // pred_fallthru
        _
      %p169 = scmp.lt.s32.totalorder %s18, 2
      // Predicated region
      $region13: #{tirg_forward.2} parent=5 // pred_check
        %p170 = pneg %p169
      $region14: #{tirg_forward.2} parent=5 // pred_check_branch
        %172 = sbr.rel (%p170) target = $region16
      $region15: #{tirg_forward.2} parent=5 // pred_region
        // Predicated region
        $region17: #{tirg_forward.2} parent=15 // pred_check
          %p173 = pneg %p38
        $region18: #{tirg_forward.2} parent=15 // pred_check_branch
          %175 = sbr.rel (%p173) target = $region20
        $region19: #{tirg_forward.2} parent=15 // pred_region
          %s176 = sand.u32 %s28, 1
          %s177 = scalar_lea.sflag [#allocation3], %s176
          %s178 = sand.u32 %s28, 1
          %s179 = smul.addr %s178, 16
          %s180 = scalar_lea.vmem [#allocation2], %s179
          %s181 = smul.u32 2, %s18
          %s183 = ssub.s32 256, 256
          %184 = vsyncadd %s177, %s183
          %s185 = smul.addr %s181, 128
          %s186 = scalar_lea.hbm %s0, %s185
          %s187 = sshll.u32 %s180, 4
          %s188 = int_to_ptr.vmem [resolvable:$true] %s187
          %193 = dma.hbm_to_vmem [thread:$0]  %s186, 256, %s188, %s177, 128, 128, 8
        $region20: #{tirg_forward.2} parent=15 // pred_fallthru
          _
        // Predicated region
        $region21: #{tirg_forward.2} parent=15 // pred_check
          %p194 = pneg %p64
        $region22: #{tirg_forward.2} parent=15 // pred_check_branch
          %196 = sbr.rel (%p194) target = $region24
        $region23: #{tirg_forward.2} parent=15 // pred_region
          %s197 = sand.u32 %s54, 1
          %s198 = scalar_lea.sflag [#allocation5], %s197
          %s199 = sand.u32 %s54, 1
          %s200 = smul.addr %s199, 16
          %s201 = scalar_lea.vmem [#allocation4], %s200
          %s202 = smul.u32 2, %s18
          %s204 = ssub.s32 256, 256
          %205 = vsyncadd %s198, %s204
          %s206 = smul.addr %s202, 128
          %s207 = scalar_lea.hbm %s1, %s206
          %s208 = sshll.u32 %s201, 4
          %s209 = int_to_ptr.vmem [resolvable:$true] %s208
          %214 = dma.hbm_to_vmem [thread:$0]  %s207, 256, %s209, %s198, 128, 128, 8
        $region24: #{tirg_forward.2} parent=15 // pred_fallthru
          _
      $region16: #{tirg_forward.2} parent=5 // pred_fallthru
        _
      %p215 = scmp.le.s32.totalorder 1, %s18
      %p216 = scmp.lt.s32.totalorder %s18, 3
      %p217 = pnand %p215, %p216
      %p218 = pneg %p217
      // Predicated region
      $region25: #{tirg_forward.2} parent=5 // pred_check
        _
      $region26: #{tirg_forward.2} parent=5 // pred_check_branch
        %220 = sbr.rel (%p217) target = $region28
      $region27: #{tirg_forward.2} parent=5 // pred_region
        %s221 = ssub.s32 %s18, 1
        %s222 = sand.u32 %s31, 1
        %s223 = scalar_lea.sflag [#allocation3], %s222
        %s224 = sand.u32 %s31, 1
        %s225 = smul.addr %s224, 16
        %s226 = scalar_lea.vmem [#allocation2], %s225
        // Predicated region
        $region29: #{tirg_forward.2} parent=27 // pred_check
          %p227 = pneg %p44
        $region30: #{tirg_forward.2} parent=27 // pred_check_branch
          %229 = sbr.rel (%p227) target = $region32
        $region31: #{tirg_forward.2} parent=27 // pred_region
          %230 = dma.done %s223, 256
        $region32: #{tirg_forward.2} parent=27 // pred_fallthru
          _
        %s231 = sand.u32 %s57, 1
        %s232 = scalar_lea.sflag [#allocation5], %s231
        %s233 = sand.u32 %s57, 1
        %s234 = smul.addr %s233, 16
        %s235 = scalar_lea.vmem [#allocation4], %s234
        // Predicated region
        $region33: #{tirg_forward.2} parent=27 // pred_check
          %p236 = pneg %p70
        $region34: #{tirg_forward.2} parent=27 // pred_check_branch
          %238 = sbr.rel (%p236) target = $region36
        $region35: #{tirg_forward.2} parent=27 // pred_region
          %239 = dma.done %s232, 256
        $region36: #{tirg_forward.2} parent=27 // pred_fallthru
          _
        %s240 = sand.u32 %s31, 1
        %s241 = scalar_lea.sflag [#allocation3], %s240
        %s242 = sand.u32 %s31, 1
        %s243 = smul.addr %s242, 16
        %s244 = scalar_lea.vmem [#allocation2], %s243
        %p245 = pneg %p44
        %p246 = pneg %p41
        %s247 = sand.u32 %s57, 1
        %s248 = scalar_lea.sflag [#allocation5], %s247
        %s249 = sand.u32 %s57, 1
        %s250 = smul.addr %s249, 16
        %s251 = scalar_lea.vmem [#allocation4], %s250
        %p252 = pneg %p70
        %p253 = pneg %p67
        %p254 = pneg %p91
        %p255 = pneg %p88
        %p256 = pneg %p112
        %p257 = pneg %p109
        %p258 = pneg %p133
        %p259 = pneg %p130
        %p260 = pneg %p154
        %p261 = pneg %p151
        %s262 = smul.u32 2, %s23
        %s263 = smul.u32 2, %s23
        %p264 = scmp.eq.s32.totalorder %s23, 0
        // Predicated region
        $region37: #{tirg_forward.2} parent=27 // pred_check
          %p265 = pneg %p264
        $region38: #{tirg_forward.2} parent=27 // pred_check_branch
          %267 = sbr.rel (%p265) target = $region40
        $region39: #{tirg_forward.2} parent=27 // pred_region
          %268 = vst [vmem:[%s2] sm:$0x1] 0.0
          %269 = vst [vmem:[%s3] sm:$0x1] 0.0
          %270 = vst [vmem:[%s4] sm:$0x1] 0.0
          %271 = vst [vmem:[%s5] sm:$0x1] 0.0
        $region40: #{tirg_forward.2} parent=27 // pred_fallthru
          _
        %v272 = vld [vmem:[%s226] sm:$0xff]
        %v273 = vld [vmem:[%s226 + $0x8] sm:$0xff]
        %v274 = vld [vmem:[%s235] sm:$0xff]
        %v275 = vld [vmem:[%s235 + $0x8] sm:$0xff]
        %v276 = vld [vmem:[%s2] sm:$0x1]
        %v277 = vadd.f32 %v272, %v273
        %v278 = vrot.slane %v277, 4
        %v279 = vadd.f32 %v277, %v278
        %v280 = vrot.slane %v279, 2
        %v281 = vadd.f32 %v279, %v280
        %v282 = vrot.slane %v281, 1
        %v283 = vadd.f32 %v281, %v282
        %v284 = vadd.f32 %v276, %v283
        %285 = vst [vmem:[%s2] sm:$0x1] %v284
        %v286 = vld [vmem:[%s3] sm:$0x1]
        %v287 = vmul.f32 %v272, %v272
        %v288 = vmul.f32 %v273, %v273
        %v289 = vadd.f32 %v287, %v288
        %v290 = vrot.slane %v289, 4
        %v291 = vadd.f32 %v289, %v290
        %v292 = vrot.slane %v291, 2
        %v293 = vadd.f32 %v291, %v292
        %v294 = vrot.slane %v293, 1
        %v295 = vadd.f32 %v293, %v294
        %v296 = vadd.f32 %v286, %v295
        %297 = vst [vmem:[%s3] sm:$0x1] %v296
        %v298 = vld [vmem:[%s4] sm:$0x1]
        %v299 = vadd.f32 %v274, %v275
        %v300 = vrot.slane %v299, 4
        %v301 = vadd.f32 %v299, %v300
        %v302 = vrot.slane %v301, 2
        %v303 = vadd.f32 %v301, %v302
        %v304 = vrot.slane %v303, 1
        %v305 = vadd.f32 %v303, %v304
        %v306 = vadd.f32 %v298, %v305
        %307 = vst [vmem:[%s4] sm:$0x1] %v306
        %v308 = vld [vmem:[%s5] sm:$0x1]
        %v309 = vmul.f32 %v274, %v274
        %v310 = vmul.f32 %v275, %v275
        %v311 = vadd.f32 %v309, %v310
        %v312 = vrot.slane %v311, 4
        %v313 = vadd.f32 %v311, %v312
        %v314 = vrot.slane %v313, 2
        %v315 = vadd.f32 %v313, %v314
        %v316 = vrot.slane %v315, 1
        %v317 = vadd.f32 %v315, %v316
        %v318 = vadd.f32 %v308, %v317
        %319 = vst [vmem:[%s5] sm:$0x1] %v318
        // Predicated region
        $region41: #{tirg_forward.2} parent=27 // pred_check
          %p320 = pneg %p88
        $region42: #{tirg_forward.2} parent=27 // pred_check_branch
          %322 = sbr.rel (%p320) target = $region44
        $region43: #{tirg_forward.2} parent=27 // pred_region
          _
        $region44: #{tirg_forward.2} parent=27 // pred_fallthru
          _
        // Predicated region
        $region45: #{tirg_forward.2} parent=27 // pred_check
          %p323 = pneg %p109
        $region46: #{tirg_forward.2} parent=27 // pred_check_branch
          %325 = sbr.rel (%p323) target = $region48
        $region47: #{tirg_forward.2} parent=27 // pred_region
          _
        $region48: #{tirg_forward.2} parent=27 // pred_fallthru
          _
        // Predicated region
        $region49: #{tirg_forward.2} parent=27 // pred_check
          %p326 = pneg %p130
        $region50: #{tirg_forward.2} parent=27 // pred_check_branch
          %328 = sbr.rel (%p326) target = $region52
        $region51: #{tirg_forward.2} parent=27 // pred_region
          _
        $region52: #{tirg_forward.2} parent=27 // pred_fallthru
          _
        // Predicated region
        $region53: #{tirg_forward.2} parent=27 // pred_check
          %p329 = pneg %p151
        $region54: #{tirg_forward.2} parent=27 // pred_check_branch
          %331 = sbr.rel (%p329) target = $region56
        $region55: #{tirg_forward.2} parent=27 // pred_region
          _
        $region56: #{tirg_forward.2} parent=27 // pred_fallthru
          _
        // Predicated region
        $region57: #{tirg_forward.2} parent=27 // pred_check
          %p332 = pneg %p88
        $region58: #{tirg_forward.2} parent=27 // pred_check_branch
          %334 = sbr.rel (%p332) target = $region60
        $region59: #{tirg_forward.2} parent=27 // pred_region
          _
        $region60: #{tirg_forward.2} parent=27 // pred_fallthru
          _
        // Predicated region
        $region61: #{tirg_forward.2} parent=27 // pred_check
          %p335 = pneg %p109
        $region62: #{tirg_forward.2} parent=27 // pred_check_branch
          %337 = sbr.rel (%p335) target = $region64
        $region63: #{tirg_forward.2} parent=27 // pred_region
          _
        $region64: #{tirg_forward.2} parent=27 // pred_fallthru
          _
        // Predicated region
        $region65: #{tirg_forward.2} parent=27 // pred_check
          %p338 = pneg %p130
        $region66: #{tirg_forward.2} parent=27 // pred_check_branch
          %340 = sbr.rel (%p338) target = $region68
        $region67: #{tirg_forward.2} parent=27 // pred_region
          _
        $region68: #{tirg_forward.2} parent=27 // pred_fallthru
          _
        // Predicated region
        $region69: #{tirg_forward.2} parent=27 // pred_check
          %p341 = pneg %p151
        $region70: #{tirg_forward.2} parent=27 // pred_check_branch
          %343 = sbr.rel (%p341) target = $region72
        $region71: #{tirg_forward.2} parent=27 // pred_region
          _
        $region72: #{tirg_forward.2} parent=27 // pred_fallthru
          _
      $region28: #{tirg_forward.2} parent=5 // pred_fallthru
        _
      %p344 = scmp.le.s32.totalorder 2, %s18
      // Predicated region
      $region73: #{tirg_forward.2} parent=5 // pred_check
        %p345 = pneg %p344
      $region74: #{tirg_forward.2} parent=5 // pred_check_branch
        %347 = sbr.rel (%p345) target = $region76
      $region75: #{tirg_forward.2} parent=5 // pred_region
        %s348 = ssub.s32 %s18, 2
      $region76: #{tirg_forward.2} parent=5 // pred_fallthru
        _
    $region6: #{tirg_forward.2} parent=1 // loop_footer
      %s22 = sadd.s32 1, %s18
    $region7: #{tirg_forward.2} parent=1 // loop_footer_branch
      %17 = sbr.rel target = $region3
    $region8: #{tirg_forward.2} parent=1 // loop_exit
      _
    %349 = vsyncpa [#allocation3], 1
    %s350 = scalar_lea.sflag [#allocation3], 1
    %351 = vsyncpa %s350, 1
    %352 = vsyncpa [#allocation5], 1
    %s353 = scalar_lea.sflag [#allocation5], 1
    %354 = vsyncpa %s353, 1

// kernel: tirg_forward.3
$region0: #{tirg_forward.3}
  #allocation0 [shape = 'u32[]', space=smem, size = 0x4, offset = 0x4, fixed_abs, tag = 'smem constant byte address 0x4 - core index']
  #allocation1 [shape = 'u32[144,128]{1,0:T(1,128)}', space=vmem, size = 0x12000, scoped, tag = 'internal scratch']
  #allocation2 [shape = 'f32[16,128]{1,0:T(8,128)}', space=vmem, size = 0x2000, scoped, tag = 'scratch operand']
  #allocation3 [shape = 'f32[16,128]{1,0:T(8,128)}', space=vmem, size = 0x2000, scoped, tag = 'scratch operand']
  #allocation4 [shape = 'bf16[16,128]{1,0:T(8,128)(2,1)}', space=vmem, size = 0x1000, scoped, tag = 'scratch operand']
  #allocation5 [shape = 'bf16[16,128]{1,0:T(8,128)(2,1)}', space=vmem, size = 0x1000, scoped, tag = 'scratch operand']
  %s0 = inlined_call_operand.vmem [shape: f32[4], index: 0, kind: input, shape index: {}]
  %s1 = inlined_call_operand.hbm [shape: f32[32,128], index: 1, kind: input, shape index: {}]
  %s2 = inlined_call_operand.hbm [shape: f32[32,128], index: 2, kind: input, shape index: {}]
  %s3 = inlined_call_operand.vmem [shape: f32[1,128], index: 3, kind: input, shape index: {}]
  %s4 = inlined_call_operand.vmem [shape: f32[1,128], index: 4, kind: input, shape index: {}]
  %s5 = inlined_call_operand.vmem [shape: f32[1,128], index: 5, kind: input, shape index: {}]
  %s6 = inlined_call_operand.vmem [shape: f32[1,128], index: 6, kind: input, shape index: {}]
  %s7 = inlined_call_operand.vmem [shape: f32[1,128], index: 7, kind: input, shape index: {}]
  %s8 = inlined_call_operand.vmem [shape: f32[1,128], index: 8, kind: input, shape index: {}]
  %s9 = inlined_call_operand.vmem [shape: f32[1,128], index: 9, kind: input, shape index: {}]
  %s10 = inlined_call_operand.vmem [shape: f32[1,128], index: 10, kind: input, shape index: {}]
  %s11 = inlined_call_operand.hbm [shape: bf16[128,128], index: 11, kind: input, shape index: {}]
  %s12 = inlined_call_operand.hbm [shape: bf16[128,128], index: 12, kind: input, shape index: {}]
  %s13 = inlined_call_operand.hbm [shape: f32[1,128], index: 13, kind: input, shape index: {}]
  %s14 = inlined_call_operand.hbm [shape: bf16[128,256], index: 14, kind: input, shape index: {}]
  %s15 = inlined_call_operand.hbm [shape: bf16[128,256], index: 15, kind: input, shape index: {}]
  %s16 = inlined_call_operand.hbm [shape: f32[1,256], index: 16, kind: input, shape index: {}]
  %s17 = inlined_call_operand.vmem [shape: bf16[256,128], index: 17, kind: input, shape index: {}]
  %s18 = inlined_call_operand.vmem [shape: f32[1,128], index: 18, kind: input, shape index: {}]
  %s19 = inlined_call_operand.hbm [shape: f32[32,128], index: 19, kind: output, shape index: {}]
  %s20 = sld [smem:[#allocation0]]
  $region153: #{tirg_forward.3} parent=0
    _
  %s22 = ssub.s32 1, %s20
  %s23 = scalar_select 0, %s22, %s20
  $region1: #{tirg_forward.3} parent=0
    #allocation6 [shape = 'u8[512]{0}', space=smem, size = 0x200, scoped, tag = 'input window, operand 0, single buffered']
    #allocation7 [shape = 's32[2]{0}', space=sflag, size = 0x8, scoped, tag = 'scoped memory for tirg_forward.3']
    #allocation8 [shape = 's32[2]{0}', space=sflag, size = 0x8, scoped, tag = 'scoped memory for tirg_forward.3']
    #allocation9 [shape = 's32[2]{0}', space=sflag, size = 0x8, scoped, tag = 'scoped memory for tirg_forward.3']
    #allocation10 [shape = 'u8[16384]{0}', space=vmem, size = 0x4000, scoped, tag = 'input window, operand 1']
    #allocation11 [shape = 'u8[16384]{0}', space=vmem, size = 0x4000, scoped, tag = 'input window, operand 2']
    #allocation12 [shape = 's32[2]{0}', space=sflag, size = 0x8, scoped, tag = 'scoped memory for tirg_forward.3']
    #allocation13 [shape = 'u8[32768]{0}', space=vmem, size = 0x8000, scoped, tag = 'input window, operand 11, single buffered']
    #allocation14 [shape = 'u8[32768]{0}', space=vmem, size = 0x8000, scoped, tag = 'input window, operand 12, single buffered']
    #allocation15 [shape = 's32[1]{0}', space=sflag, size = 0x4, scoped, tag = 'scoped memory for tirg_forward.3']
    #allocation16 [shape = 'u8[512]{0}', space=vmem, size = 0x400, scoped, tag = 'input window, operand 13, single buffered']
    #allocation17 [shape = 'u8[65536]{0}', space=vmem, size = 0x10000, scoped, tag = 'input window, operand 14']
    #allocation18 [shape = 's32[2]{0}', space=sflag, size = 0x8, scoped, tag = 'scoped memory for tirg_forward.3']
    #allocation19 [shape = 'u8[65536]{0}', space=vmem, size = 0x10000, scoped, tag = 'input window, operand 15']
    #allocation20 [shape = 'u8[1024]{0}', space=vmem, size = 0x400, scoped, tag = 'input window, operand 16']
    #allocation21 [shape = 's32[2]{0}', space=sflag, size = 0x8, scoped, tag = 'scoped memory for tirg_forward.3']
    #allocation22 [shape = 'u8[16384]{0}', space=vmem, size = 0x4000, scoped, tag = 'output window, operand 0']
    %24 = vsyncpa [#allocation9], 0
    %25 = vsyncpa [#allocation7], 0
    %s26 = scalar_lea.sflag [#allocation7], 1
    %27 = vsyncpa %s26, 0
    %28 = vsyncpa [#allocation12], 0
    %s29 = scalar_lea.sflag [#allocation12], 1
    %30 = vsyncpa %s29, 0
    %31 = vsyncpa [#allocation15], 0
    %32 = vsyncpa [#allocation18], 0
    %s33 = scalar_lea.sflag [#allocation18], 1
    %34 = vsyncpa %s33, 0
    %35 = vsyncpa [#allocation21], 0
    %s36 = scalar_lea.sflag [#allocation21], 1
    %37 = vsyncpa %s36, 0
    %38 = vsyncpa [#allocation8], 0
    %s39 = scalar_lea.sflag [#allocation8], 1
    %40 = vsyncpa %s39, 0
    loop: start=0, step=1, limit=6
    $region2: #{tirg_forward.3} parent=1 // loop_pre_header
      _
    $region3: #{tirg_forward.3} parent=1 // loop_header
      %s42 = sphi 0, %s46
      %p43 = scmp.ge.s32.totalorder %s42, 6
      %s49 = sphi 0, %s61
      %s50 = sphi 0, %s57
      %s51 = sphi 0, %s49
      %s52 = sphi 0, %s50
      %s53 = sphi 0, %s51
      %s54 = sphi 0, %s52
      %s62 = sphi 0, %s62
      %s64 = sphi 0, %s62
      %s65 = sphi 0, %s64
      %s79 = sphi 0, %s65
      %s85 = sphi 0, %s87
      %s88 = sphi 0, %s85
      %s89 = sphi 0, %s88
      %s105 = sphi 0, %s89
      %s111 = sphi 0, %s113
      %s114 = sphi 0, %s111
      %s115 = sphi 0, %s114
      %s131 = sphi 0, %s115
      %s135 = sphi 0, %s135
      %s137 = sphi 0, %s135
      %s138 = sphi 0, %s137
      %s152 = sphi 0, %s138
      %s156 = sphi 0, %s156
      %s158 = sphi 0, %s156
      %s159 = sphi 0, %s158
      %s173 = sphi 0, %s159
      %s177 = sphi 0, %s177
      %s179 = sphi 0, %s177
      %s180 = sphi 0, %s179
      %s194 = sphi 0, %s180
      %s198 = sphi 0, %s198
      %s200 = sphi 0, %s198
      %s201 = sphi 0, %s200
      %s215 = sphi 0, %s201
      %s219 = sphi 0, %s219
      %s221 = sphi 0, %s219
      %s222 = sphi 0, %s221
      %s236 = sphi 0, %s222
      %s240 = sphi 0, %s240
      %s242 = sphi 0, %s240
      %s243 = sphi 0, %s242
      %s257 = sphi 0, %s243
      %s261 = sphi 0, %s261
      %s263 = sphi 0, %s261
      %s264 = sphi 0, %s263
      %s278 = sphi 0, %s264
      %s282 = sphi 0, %s282
      %s284 = sphi 0, %s282
      %s285 = sphi 0, %s284
      %s299 = sphi 0, %s285
      %s303 = sphi 0, %s303
      %s305 = sphi 0, %s303
      %s306 = sphi 0, %s305
      %s320 = sphi 0, %s306
      %s324 = sphi 0, %s324
      %s326 = sphi 0, %s324
      %s327 = sphi 0, %s326
      %s341 = sphi 0, %s327
      %s345 = sphi 0, %s345
      %s347 = sphi 0, %s345
      %s348 = sphi 0, %s347
      %s362 = sphi 0, %s348
      %s368 = sphi 0, %s370
      %s371 = sphi 0, %s368
      %s372 = sphi 0, %s371
      %s388 = sphi 0, %s372
      %s394 = sphi 0, %s396
      %s397 = sphi 0, %s394
      %s398 = sphi 0, %s397
      %s414 = sphi 0, %s398
      %s420 = sphi 0, %s422
      %s423 = sphi 0, %s420
      %s424 = sphi 0, %s423
      %s440 = sphi 0, %s424
      %s446 = sphi 0, %s448
      %s449 = sphi 0, %s446
      %s450 = sphi 0, %s449
      %s466 = sphi 0, %s450
      %s470 = sphi 0, %s470
      %s472 = sphi 0, %s470
      %s473 = sphi 0, %s472
      %s487 = sphi 0, %s473
      %s493 = sphi 0, %s495
      %s496 = sphi 0, %s493
      %s497 = sphi 0, %s496
      %s513 = sphi 0, %s497
    $region4: #{tirg_forward.3} parent=1 // loop_header_branch
      %45 = sbr.rel (%p43) target = $region8
    $region5: #{tirg_forward.3} parent=1 // loop_body
      %s47 = ssub.s32 %s42, 1
      %s48 = ssub.s32 %s42, 2
      %s55 = sadd.s32 1, %s50
      %p56 = scmp.ge.s32.totalorder %s55, 2
      %s57 = scalar_select %p56, 0, %s55
      %s58 = sadd.s32 1, %s49
      %s59 = scalar_select %p56, %s58, %s49
      %p60 = scmp.ge.s32.totalorder %s59, 2
      %s61 = scalar_select %p60, 0, %s59
      %s63 = sadd.s32 %s62, 1
      %p66 = scmp.eq.s32.totalorder %s42, 3
      %p67 = scmp.ne.s32.totalorder %s62, %s64
      %p68 = scmp.eq.s32.totalorder %s42, 0
      %p69 = por %p67, %p68
      %p70 = scmp.ne.s32.totalorder %s62, %s64
      %p71 = scmp.eq.s32.totalorder %s47, 3
      %p72 = por %p70, %p71
      %p73 = scmp.ne.s32.totalorder %s64, %s65
      %p74 = scmp.eq.s32.totalorder %s47, 0
      %p75 = por %p73, %p74
      %p76 = scmp.ne.s32.totalorder %s64, %s65
      %p77 = scmp.eq.s32.totalorder %s48, 3
      %p78 = por %p76, %p77
      %p80 = scmp.ne.s32.totalorder %s65, %s79
      %p81 = scmp.eq.s32.totalorder %s48, 0
      %p82 = por %p80, %p81
      %s83 = ssub.s32 %s49, %s61
      %p84 = scmp.eq.s32.totalorder %s83, 0
      %s86 = sadd.s32 %s85, 1
      %s87 = scalar_select %p84, %s85, %s86
      %p90 = pneg %p84
      %p91 = scmp.eq.s32.totalorder %s42, 3
      %p92 = por %p90, %p91
      %p93 = scmp.ne.s32.totalorder %s85, %s88
      %p94 = scmp.eq.s32.totalorder %s42, 0
      %p95 = por %p93, %p94
      %p96 = scmp.ne.s32.totalorder %s85, %s88
      %p97 = scmp.eq.s32.totalorder %s47, 3
      %p98 = por %p96, %p97
      %p99 = scmp.ne.s32.totalorder %s88, %s89
      %p100 = scmp.eq.s32.totalorder %s47, 0
      %p101 = por %p99, %p100
      %p102 = scmp.ne.s32.totalorder %s88, %s89
      %p103 = scmp.eq.s32.totalorder %s48, 3
      %p104 = por %p102, %p103
      %p106 = scmp.ne.s32.totalorder %s89, %s105
      %p107 = scmp.eq.s32.totalorder %s48, 0
      %p108 = por %p106, %p107
      %s109 = ssub.s32 %s49, %s61
      %p110 = scmp.eq.s32.totalorder %s109, 0
      %s112 = sadd.s32 %s111, 1
      %s113 = scalar_select %p110, %s111, %s112
      %p116 = pneg %p110
      %p117 = scmp.eq.s32.totalorder %s42, 3
      %p118 = por %p116, %p117
      %p119 = scmp.ne.s32.totalorder %s111, %s114
      %p120 = scmp.eq.s32.totalorder %s42, 0
      %p121 = por %p119, %p120
      %p122 = scmp.ne.s32.totalorder %s111, %s114
      %p123 = scmp.eq.s32.totalorder %s47, 3
      %p124 = por %p122, %p123
      %p125 = scmp.ne.s32.totalorder %s114, %s115
      %p126 = scmp.eq.s32.totalorder %s47, 0
      %p127 = por %p125, %p126
      %p128 = scmp.ne.s32.totalorder %s114, %s115
      %p129 = scmp.eq.s32.totalorder %s48, 3
      %p130 = por %p128, %p129
      %p132 = scmp.ne.s32.totalorder %s115, %s131
      %p133 = scmp.eq.s32.totalorder %s48, 0
      %p134 = por %p132, %p133
      %s136 = sadd.s32 %s135, 1
      %p139 = scmp.eq.s32.totalorder %s42, 3
      %p140 = scmp.ne.s32.totalorder %s135, %s137
      %p141 = scmp.eq.s32.totalorder %s42, 0
      %p142 = por %p140, %p141
      %p143 = scmp.ne.s32.totalorder %s135, %s137
      %p144 = scmp.eq.s32.totalorder %s47, 3
      %p145 = por %p143, %p144
      %p146 = scmp.ne.s32.totalorder %s137, %s138
      %p147 = scmp.eq.s32.totalorder %s47, 0
      %p148 = por %p146, %p147
      %p149 = scmp.ne.s32.totalorder %s137, %s138
      %p150 = scmp.eq.s32.totalorder %s48, 3
      %p151 = por %p149, %p150
      %p153 = scmp.ne.s32.totalorder %s138, %s152
      %p154 = scmp.eq.s32.totalorder %s48, 0
      %p155 = por %p153, %p154
      %s157 = sadd.s32 %s156, 1
      %p160 = scmp.eq.s32.totalorder %s42, 3
      %p161 = scmp.ne.s32.totalorder %s156, %s158
      %p162 = scmp.eq.s32.totalorder %s42, 0
      %p163 = por %p161, %p162
      %p164 = scmp.ne.s32.totalorder %s156, %s158
      %p165 = scmp.eq.s32.totalorder %s47, 3
      %p166 = por %p164, %p165
      %p167 = scmp.ne.s32.totalorder %s158, %s159
      %p168 = scmp.eq.s32.totalorder %s47, 0
      %p169 = por %p167, %p168
      %p170 = scmp.ne.s32.totalorder %s158, %s159
      %p171 = scmp.eq.s32.totalorder %s48, 3
      %p172 = por %p170, %p171
      %p174 = scmp.ne.s32.totalorder %s159, %s173
      %p175 = scmp.eq.s32.totalorder %s48, 0
      %p176 = por %p174, %p175
      %s178 = sadd.s32 %s177, 1
      %p181 = scmp.eq.s32.totalorder %s42, 3
      %p182 = scmp.ne.s32.totalorder %s177, %s179
      %p183 = scmp.eq.s32.totalorder %s42, 0
      %p184 = por %p182, %p183
      %p185 = scmp.ne.s32.totalorder %s177, %s179
      %p186 = scmp.eq.s32.totalorder %s47, 3
      %p187 = por %p185, %p186
      %p188 = scmp.ne.s32.totalorder %s179, %s180
      %p189 = scmp.eq.s32.totalorder %s47, 0
      %p190 = por %p188, %p189
      %p191 = scmp.ne.s32.totalorder %s179, %s180
      %p192 = scmp.eq.s32.totalorder %s48, 3
      %p193 = por %p191, %p192
      %p195 = scmp.ne.s32.totalorder %s180, %s194
      %p196 = scmp.eq.s32.totalorder %s48, 0
      %p197 = por %p195, %p196
      %s199 = sadd.s32 %s198, 1
      %p202 = scmp.eq.s32.totalorder %s42, 3
      %p203 = scmp.ne.s32.totalorder %s198, %s200
      %p204 = scmp.eq.s32.totalorder %s42, 0
      %p205 = por %p203, %p204
      %p206 = scmp.ne.s32.totalorder %s198, %s200
      %p207 = scmp.eq.s32.totalorder %s47, 3
      %p208 = por %p206, %p207
      %p209 = scmp.ne.s32.totalorder %s200, %s201
      %p210 = scmp.eq.s32.totalorder %s47, 0
      %p211 = por %p209, %p210
      %p212 = scmp.ne.s32.totalorder %s200, %s201
      %p213 = scmp.eq.s32.totalorder %s48, 3
      %p214 = por %p212, %p213
      %p216 = scmp.ne.s32.totalorder %s201, %s215
      %p217 = scmp.eq.s32.totalorder %s48, 0
      %p218 = por %p216, %p217
      %s220 = sadd.s32 %s219, 1
      %p223 = scmp.eq.s32.totalorder %s42, 3
      %p224 = scmp.ne.s32.totalorder %s219, %s221
      %p225 = scmp.eq.s32.totalorder %s42, 0
      %p226 = por %p224, %p225
      %p227 = scmp.ne.s32.totalorder %s219, %s221
      %p228 = scmp.eq.s32.totalorder %s47, 3
      %p229 = por %p227, %p228
      %p230 = scmp.ne.s32.totalorder %s221, %s222
      %p231 = scmp.eq.s32.totalorder %s47, 0
      %p232 = por %p230, %p231
      %p233 = scmp.ne.s32.totalorder %s221, %s222
      %p234 = scmp.eq.s32.totalorder %s48, 3
      %p235 = por %p233, %p234
      %p237 = scmp.ne.s32.totalorder %s222, %s236
      %p238 = scmp.eq.s32.totalorder %s48, 0
      %p239 = por %p237, %p238
      %s241 = sadd.s32 %s240, 1
      %p244 = scmp.eq.s32.totalorder %s42, 3
      %p245 = scmp.ne.s32.totalorder %s240, %s242
      %p246 = scmp.eq.s32.totalorder %s42, 0
      %p247 = por %p245, %p246
      %p248 = scmp.ne.s32.totalorder %s240, %s242
      %p249 = scmp.eq.s32.totalorder %s47, 3
      %p250 = por %p248, %p249
      %p251 = scmp.ne.s32.totalorder %s242, %s243
      %p252 = scmp.eq.s32.totalorder %s47, 0
      %p253 = por %p251, %p252
      %p254 = scmp.ne.s32.totalorder %s242, %s243
      %p255 = scmp.eq.s32.totalorder %s48, 3
      %p256 = por %p254, %p255
      %p258 = scmp.ne.s32.totalorder %s243, %s257
      %p259 = scmp.eq.s32.totalorder %s48, 0
      %p260 = por %p258, %p259
      %s262 = sadd.s32 %s261, 1
      %p265 = scmp.eq.s32.totalorder %s42, 3
      %p266 = scmp.ne.s32.totalorder %s261, %s263
      %p267 = scmp.eq.s32.totalorder %s42, 0
      %p268 = por %p266, %p267
      %p269 = scmp.ne.s32.totalorder %s261, %s263
      %p270 = scmp.eq.s32.totalorder %s47, 3
      %p271 = por %p269, %p270
      %p272 = scmp.ne.s32.totalorder %s263, %s264
      %p273 = scmp.eq.s32.totalorder %s47, 0
      %p274 = por %p272, %p273
      %p275 = scmp.ne.s32.totalorder %s263, %s264
      %p276 = scmp.eq.s32.totalorder %s48, 3
      %p277 = por %p275, %p276
      %p279 = scmp.ne.s32.totalorder %s264, %s278
      %p280 = scmp.eq.s32.totalorder %s48, 0
      %p281 = por %p279, %p280
      %s283 = sadd.s32 %s282, 1
      %p286 = scmp.eq.s32.totalorder %s42, 3
      %p287 = scmp.ne.s32.totalorder %s282, %s284
      %p288 = scmp.eq.s32.totalorder %s42, 0
      %p289 = por %p287, %p288
      %p290 = scmp.ne.s32.totalorder %s282, %s284
      %p291 = scmp.eq.s32.totalorder %s47, 3
      %p292 = por %p290, %p291
      %p293 = scmp.ne.s32.totalorder %s284, %s285
      %p294 = scmp.eq.s32.totalorder %s47, 0
      %p295 = por %p293, %p294
      %p296 = scmp.ne.s32.totalorder %s284, %s285
      %p297 = scmp.eq.s32.totalorder %s48, 3
      %p298 = por %p296, %p297
      %p300 = scmp.ne.s32.totalorder %s285, %s299
      %p301 = scmp.eq.s32.totalorder %s48, 0
      %p302 = por %p300, %p301
      %s304 = sadd.s32 %s303, 1
      %p307 = scmp.eq.s32.totalorder %s42, 3
      %p308 = scmp.ne.s32.totalorder %s303, %s305
      %p309 = scmp.eq.s32.totalorder %s42, 0
      %p310 = por %p308, %p309
      %p311 = scmp.ne.s32.totalorder %s303, %s305
      %p312 = scmp.eq.s32.totalorder %s47, 3
      %p313 = por %p311, %p312
      %p314 = scmp.ne.s32.totalorder %s305, %s306
      %p315 = scmp.eq.s32.totalorder %s47, 0
      %p316 = por %p314, %p315
      %p317 = scmp.ne.s32.totalorder %s305, %s306
      %p318 = scmp.eq.s32.totalorder %s48, 3
      %p319 = por %p317, %p318
      %p321 = scmp.ne.s32.totalorder %s306, %s320
      %p322 = scmp.eq.s32.totalorder %s48, 0
      %p323 = por %p321, %p322
      %s325 = sadd.s32 %s324, 1
      %p328 = scmp.eq.s32.totalorder %s42, 3
      %p329 = scmp.ne.s32.totalorder %s324, %s326
      %p330 = scmp.eq.s32.totalorder %s42, 0
      %p331 = por %p329, %p330
      %p332 = scmp.ne.s32.totalorder %s324, %s326
      %p333 = scmp.eq.s32.totalorder %s47, 3
      %p334 = por %p332, %p333
      %p335 = scmp.ne.s32.totalorder %s326, %s327
      %p336 = scmp.eq.s32.totalorder %s47, 0
      %p337 = por %p335, %p336
      %p338 = scmp.ne.s32.totalorder %s326, %s327
      %p339 = scmp.eq.s32.totalorder %s48, 3
      %p340 = por %p338, %p339
      %p342 = scmp.ne.s32.totalorder %s327, %s341
      %p343 = scmp.eq.s32.totalorder %s48, 0
      %p344 = por %p342, %p343
      %s346 = sadd.s32 %s345, 1
      %p349 = scmp.eq.s32.totalorder %s42, 3
      %p350 = scmp.ne.s32.totalorder %s345, %s347
      %p351 = scmp.eq.s32.totalorder %s42, 0
      %p352 = por %p350, %p351
      %p353 = scmp.ne.s32.totalorder %s345, %s347
      %p354 = scmp.eq.s32.totalorder %s47, 3
      %p355 = por %p353, %p354
      %p356 = scmp.ne.s32.totalorder %s347, %s348
      %p357 = scmp.eq.s32.totalorder %s47, 0
      %p358 = por %p356, %p357
      %p359 = scmp.ne.s32.totalorder %s347, %s348
      %p360 = scmp.eq.s32.totalorder %s48, 3
      %p361 = por %p359, %p360
      %p363 = scmp.ne.s32.totalorder %s348, %s362
      %p364 = scmp.eq.s32.totalorder %s48, 0
      %p365 = por %p363, %p364
      %s366 = ssub.s32 %s50, %s57
      %p367 = scmp.eq.s32.totalorder %s366, 0
      %s369 = sadd.s32 %s368, 1
      %s370 = scalar_select %p367, %s368, %s369
      %p373 = pneg %p367
      %p374 = scmp.eq.s32.totalorder %s42, 3
      %p375 = por %p373, %p374
      %p376 = scmp.ne.s32.totalorder %s368, %s371
      %p377 = scmp.eq.s32.totalorder %s42, 0
      %p378 = por %p376, %p377
      %p379 = scmp.ne.s32.totalorder %s368, %s371
      %p380 = scmp.eq.s32.totalorder %s47, 3
      %p381 = por %p379, %p380
      %p382 = scmp.ne.s32.totalorder %s371, %s372
      %p383 = scmp.eq.s32.totalorder %s47, 0
      %p384 = por %p382, %p383
      %p385 = scmp.ne.s32.totalorder %s371, %s372
      %p386 = scmp.eq.s32.totalorder %s48, 3
      %p387 = por %p385, %p386
      %p389 = scmp.ne.s32.totalorder %s372, %s388
      %p390 = scmp.eq.s32.totalorder %s48, 0
      %p391 = por %p389, %p390
      %s392 = ssub.s32 %s50, %s57
      %p393 = scmp.eq.s32.totalorder %s392, 0
      %s395 = sadd.s32 %s394, 1
      %s396 = scalar_select %p393, %s394, %s395
      %p399 = pneg %p393
      %p400 = scmp.eq.s32.totalorder %s42, 3
      %p401 = por %p399, %p400
      %p402 = scmp.ne.s32.totalorder %s394, %s397
      %p403 = scmp.eq.s32.totalorder %s42, 0
      %p404 = por %p402, %p403
      %p405 = scmp.ne.s32.totalorder %s394, %s397
      %p406 = scmp.eq.s32.totalorder %s47, 3
      %p407 = por %p405, %p406
      %p408 = scmp.ne.s32.totalorder %s397, %s398
      %p409 = scmp.eq.s32.totalorder %s47, 0
      %p410 = por %p408, %p409
      %p411 = scmp.ne.s32.totalorder %s397, %s398
      %p412 = scmp.eq.s32.totalorder %s48, 3
      %p413 = por %p411, %p412
      %p415 = scmp.ne.s32.totalorder %s398, %s414
      %p416 = scmp.eq.s32.totalorder %s48, 0
      %p417 = por %p415, %p416
      %s418 = ssub.s32 %s50, %s57
      %p419 = scmp.eq.s32.totalorder %s418, 0
      %s421 = sadd.s32 %s420, 1
      %s422 = scalar_select %p419, %s420, %s421
      %p425 = pneg %p419
      %p426 = scmp.eq.s32.totalorder %s42, 3
      %p427 = por %p425, %p426
      %p428 = scmp.ne.s32.totalorder %s420, %s423
      %p429 = scmp.eq.s32.totalorder %s42, 0
      %p430 = por %p428, %p429
      %p431 = scmp.ne.s32.totalorder %s420, %s423
      %p432 = scmp.eq.s32.totalorder %s47, 3
      %p433 = por %p431, %p432
      %p434 = scmp.ne.s32.totalorder %s423, %s424
      %p435 = scmp.eq.s32.totalorder %s47, 0
      %p436 = por %p434, %p435
      %p437 = scmp.ne.s32.totalorder %s423, %s424
      %p438 = scmp.eq.s32.totalorder %s48, 3
      %p439 = por %p437, %p438
      %p441 = scmp.ne.s32.totalorder %s424, %s440
      %p442 = scmp.eq.s32.totalorder %s48, 0
      %p443 = por %p441, %p442
      %s444 = ssub.s32 %s50, %s57
      %p445 = scmp.eq.s32.totalorder %s444, 0
      %s447 = sadd.s32 %s446, 1
      %s448 = scalar_select %p445, %s446, %s447
      %p451 = pneg %p445
      %p452 = scmp.eq.s32.totalorder %s42, 3
      %p453 = por %p451, %p452
      %p454 = scmp.ne.s32.totalorder %s446, %s449
      %p455 = scmp.eq.s32.totalorder %s42, 0
      %p456 = por %p454, %p455
      %p457 = scmp.ne.s32.totalorder %s446, %s449
      %p458 = scmp.eq.s32.totalorder %s47, 3
      %p459 = por %p457, %p458
      %p460 = scmp.ne.s32.totalorder %s449, %s450
      %p461 = scmp.eq.s32.totalorder %s47, 0
      %p462 = por %p460, %p461
      %p463 = scmp.ne.s32.totalorder %s449, %s450
      %p464 = scmp.eq.s32.totalorder %s48, 3
      %p465 = por %p463, %p464
      %p467 = scmp.ne.s32.totalorder %s450, %s466
      %p468 = scmp.eq.s32.totalorder %s48, 0
      %p469 = por %p467, %p468
      %s471 = sadd.s32 %s470, 1
      %p474 = scmp.eq.s32.totalorder %s42, 3
      %p475 = scmp.ne.s32.totalorder %s470, %s472
      %p476 = scmp.eq.s32.totalorder %s42, 0
      %p477 = por %p475, %p476
      %p478 = scmp.ne.s32.totalorder %s470, %s472
      %p479 = scmp.eq.s32.totalorder %s47, 3
      %p480 = por %p478, %p479
      %p481 = scmp.ne.s32.totalorder %s472, %s473
      %p482 = scmp.eq.s32.totalorder %s47, 0
      %p483 = por %p481, %p482
      %p484 = scmp.ne.s32.totalorder %s472, %s473
      %p485 = scmp.eq.s32.totalorder %s48, 3
      %p486 = por %p484, %p485
      %p488 = scmp.ne.s32.totalorder %s473, %s487
      %p489 = scmp.eq.s32.totalorder %s48, 0
      %p490 = por %p488, %p489
      %s491 = ssub.s32 %s49, %s61
      %p492 = scmp.eq.s32.totalorder %s491, 0
      %s494 = sadd.s32 %s493, 1
      %s495 = scalar_select %p492, %s493, %s494
      %p498 = pneg %p492
      %p499 = scmp.eq.s32.totalorder %s42, 3
      %p500 = por %p498, %p499
      %p501 = scmp.ne.s32.totalorder %s493, %s496
      %p502 = scmp.eq.s32.totalorder %s42, 0
      %p503 = por %p501, %p502
      %p504 = scmp.ne.s32.totalorder %s493, %s496
      %p505 = scmp.eq.s32.totalorder %s47, 3
      %p506 = por %p504, %p505
      %p507 = scmp.ne.s32.totalorder %s496, %s497
      %p508 = scmp.eq.s32.totalorder %s47, 0
      %p509 = por %p507, %p508
      %p510 = scmp.ne.s32.totalorder %s496, %s497
      %p511 = scmp.eq.s32.totalorder %s48, 3
      %p512 = por %p510, %p511
      %p514 = scmp.ne.s32.totalorder %s497, %s513
      %p515 = scmp.eq.s32.totalorder %s48, 0
      %p516 = por %p514, %p515
      %p517 = scmp.le.s32.totalorder 1, %s42
      %p518 = scmp.lt.s32.totalorder %s42, 5
      %p519 = pnand %p517, %p518
      %p520 = pneg %p519
      // Predicated region
      $region9: #{tirg_forward.3} parent=5 // pred_check
        _
      $region10: #{tirg_forward.3} parent=5 // pred_check_branch
        %522 = sbr.rel (%p519) target = $region12
      $region11: #{tirg_forward.3} parent=5 // pred_region
        %s523 = ssub.s32 %s42, 1
        // Predicated region
        $region13: #{tirg_forward.3} parent=11 // pred_check
          %p524 = pneg %p75
        $region14: #{tirg_forward.3} parent=11 // pred_check_branch
          %526 = sbr.rel (%p524) target = $region16
        $region15: #{tirg_forward.3} parent=11 // pred_region
          %s528 = ssub.s32 16, 16
          %529 = vsyncadd [#allocation9], %s528
          %s531 = sshll.u32 %s0, 4
          %s532 = int_to_ptr.vmem [resolvable:$true] %s531
          %534 = dma.vmem_to_smem %s532, 16, [#allocation6], [#allocation9]
        $region16: #{tirg_forward.3} parent=11 // pred_fallthru
          _
        // Predicated region
        $region17: #{tirg_forward.3} parent=11 // pred_check
          %p535 = pneg %p148
        $region18: #{tirg_forward.3} parent=11 // pred_check_branch
          %537 = sbr.rel (%p535) target = $region20
        $region19: #{tirg_forward.3} parent=11 // pred_region
          _
        $region20: #{tirg_forward.3} parent=11 // pred_fallthru
          _
        // Predicated region
        $region21: #{tirg_forward.3} parent=11 // pred_check
          %p538 = pneg %p169
        $region22: #{tirg_forward.3} parent=11 // pred_check_branch
          %540 = sbr.rel (%p538) target = $region24
        $region23: #{tirg_forward.3} parent=11 // pred_region
          _
        $region24: #{tirg_forward.3} parent=11 // pred_fallthru
          _
        // Predicated region
        $region25: #{tirg_forward.3} parent=11 // pred_check
          %p541 = pneg %p190
        $region26: #{tirg_forward.3} parent=11 // pred_check_branch
          %543 = sbr.rel (%p541) target = $region28
        $region27: #{tirg_forward.3} parent=11 // pred_region
          _
        $region28: #{tirg_forward.3} parent=11 // pred_fallthru
          _
        // Predicated region
        $region29: #{tirg_forward.3} parent=11 // pred_check
          %p544 = pneg %p211
        $region30: #{tirg_forward.3} parent=11 // pred_check_branch
          %546 = sbr.rel (%p544) target = $region32
        $region31: #{tirg_forward.3} parent=11 // pred_region
          _
        $region32: #{tirg_forward.3} parent=11 // pred_fallthru
          _
        // Predicated region
        $region33: #{tirg_forward.3} parent=11 // pred_check
          %p547 = pneg %p232
        $region34: #{tirg_forward.3} parent=11 // pred_check_branch
          %549 = sbr.rel (%p547) target = $region36
        $region35: #{tirg_forward.3} parent=11 // pred_region
          _
        $region36: #{tirg_forward.3} parent=11 // pred_fallthru
          _
        // Predicated region
        $region37: #{tirg_forward.3} parent=11 // pred_check
          %p550 = pneg %p253
        $region38: #{tirg_forward.3} parent=11 // pred_check_branch
          %552 = sbr.rel (%p550) target = $region40
        $region39: #{tirg_forward.3} parent=11 // pred_region
          _
        $region40: #{tirg_forward.3} parent=11 // pred_fallthru
          _
        // Predicated region
        $region41: #{tirg_forward.3} parent=11 // pred_check
          %p553 = pneg %p274
        $region42: #{tirg_forward.3} parent=11 // pred_check_branch
          %555 = sbr.rel (%p553) target = $region44
        $region43: #{tirg_forward.3} parent=11 // pred_region
          _
        $region44: #{tirg_forward.3} parent=11 // pred_fallthru
          _
        // Predicated region
        $region45: #{tirg_forward.3} parent=11 // pred_check
          %p556 = pneg %p295
        $region46: #{tirg_forward.3} parent=11 // pred_check_branch
          %558 = sbr.rel (%p556) target = $region48
        $region47: #{tirg_forward.3} parent=11 // pred_region
          _
        $region48: #{tirg_forward.3} parent=11 // pred_fallthru
          _
        // Predicated region
        $region49: #{tirg_forward.3} parent=11 // pred_check
          %p559 = pneg %p316
        $region50: #{tirg_forward.3} parent=11 // pred_check_branch
          %561 = sbr.rel (%p559) target = $region52
        $region51: #{tirg_forward.3} parent=11 // pred_region
          %s563 = ssub.s32 1024, 1024
          %564 = vsyncadd [#allocation12], %s563
          %s565 = sshll.u32 [#allocation13], 4
          %s566 = int_to_ptr.vmem [resolvable:$true] %s565
          %571 = dma.hbm_to_vmem [thread:$0]  %s11, 1024, %s566, [#allocation12], 64, 64, 4
        $region52: #{tirg_forward.3} parent=11 // pred_fallthru
          _
        // Predicated region
        $region53: #{tirg_forward.3} parent=11 // pred_check
          %p572 = pneg %p337
        $region54: #{tirg_forward.3} parent=11 // pred_check_branch
          %574 = sbr.rel (%p572) target = $region56
        $region55: #{tirg_forward.3} parent=11 // pred_region
          %s576 = ssub.s32 1024, 1024
          %577 = vsyncadd [#allocation15], %s576
          %s578 = sshll.u32 [#allocation14], 4
          %s579 = int_to_ptr.vmem [resolvable:$true] %s578
          %584 = dma.hbm_to_vmem [thread:$0]  %s12, 1024, %s579, [#allocation15], 64, 64, 4
        $region56: #{tirg_forward.3} parent=11 // pred_fallthru
          _
        // Predicated region
        $region57: #{tirg_forward.3} parent=11 // pred_check
          %p585 = pneg %p358
        $region58: #{tirg_forward.3} parent=11 // pred_check_branch
          %587 = sbr.rel (%p585) target = $region60
        $region59: #{tirg_forward.3} parent=11 // pred_region
          %s589 = ssub.s32 16, 16
          %590 = vsyncadd [#allocation15], %s589
          %s592 = sshll.u32 [#allocation16], 4
          %s593 = int_to_ptr.vmem [resolvable:$true] %s592
          %595 = dma.hbm_to_vmem [thread:$0]  %s13, 16, %s593, [#allocation15]
        $region60: #{tirg_forward.3} parent=11 // pred_fallthru
          _
        // Predicated region
        $region61: #{tirg_forward.3} parent=11 // pred_check
          %p596 = pneg %p483
        $region62: #{tirg_forward.3} parent=11 // pred_check_branch
          %598 = sbr.rel (%p596) target = $region64
        $region63: #{tirg_forward.3} parent=11 // pred_region
          _
        $region64: #{tirg_forward.3} parent=11 // pred_fallthru
          _
      $region12: #{tirg_forward.3} parent=5 // pred_fallthru
        _
      %p599 = scmp.lt.s32.totalorder %s42, 4
      // Predicated region
      $region65: #{tirg_forward.3} parent=5 // pred_check
        %p600 = pneg %p599
      $region66: #{tirg_forward.3} parent=5 // pred_check_branch
        %602 = sbr.rel (%p600) target = $region68
      $region67: #{tirg_forward.3} parent=5 // pred_region
        // Predicated region
        $region69: #{tirg_forward.3} parent=67 // pred_check
          %p603 = pneg %p95
        $region70: #{tirg_forward.3} parent=67 // pred_check_branch
          %605 = sbr.rel (%p603) target = $region72
        $region71: #{tirg_forward.3} parent=67 // pred_region
          %s606 = sand.u32 %s85, 1
          %s607 = scalar_lea.sflag [#allocation7], %s606
          %s608 = sand.u32 %s85, 1
          %s609 = smul.addr %s608, 16
          %s610 = scalar_lea.vmem [#allocation10], %s609
          %s611 = smul.u32 2, %s49
          %s613 = ssub.s32 256, 256
          %614 = vsyncadd %s607, %s613
          %s615 = smul.addr %s611, 128
          %s616 = scalar_lea.hbm %s1, %s615
          %s617 = sshll.u32 %s610, 4
          %s618 = int_to_ptr.vmem [resolvable:$true] %s617
          %623 = dma.hbm_to_vmem [thread:$0]  %s616, 256, %s618, %s607, 128, 128, 8
        $region72: #{tirg_forward.3} parent=67 // pred_fallthru
          _
        // Predicated region
        $region73: #{tirg_forward.3} parent=67 // pred_check
          %p624 = pneg %p121
        $region74: #{tirg_forward.3} parent=67 // pred_check_branch
          %626 = sbr.rel (%p624) target = $region76
        $region75: #{tirg_forward.3} parent=67 // pred_region
          %s627 = sand.u32 %s42, 1
          %s628 = scalar_lea.sflag [#allocation12], %s627
          %s629 = sand.u32 %s111, 1
          %s630 = smul.addr %s629, 16
          %s631 = scalar_lea.vmem [#allocation11], %s630
          %s632 = smul.u32 2, %s49
          %s634 = ssub.s32 256, 256
          %635 = vsyncadd %s628, %s634
          %s636 = smul.addr %s632, 128
          %s637 = scalar_lea.hbm %s2, %s636
          %s638 = sshll.u32 %s631, 4
          %s639 = int_to_ptr.vmem [resolvable:$true] %s638
          %644 = dma.hbm_to_vmem [thread:$0]  %s637, 256, %s639, %s628, 128, 128, 8
        $region76: #{tirg_forward.3} parent=67 // pred_fallthru
          _
        // Predicated region
        $region77: #{tirg_forward.3} parent=67 // pred_check
          %p645 = pneg %p378
        $region78: #{tirg_forward.3} parent=67 // pred_check_branch
          %647 = sbr.rel (%p645) target = $region80
        $region79: #{tirg_forward.3} parent=67 // pred_region
          %s648 = sand.u32 %s42, 1
          %s649 = scalar_lea.sflag [#allocation18], %s648
          %s650 = sand.u32 %s368, 1
          %s651 = smul.addr %s650, 64
          %s652 = scalar_lea.vmem [#allocation17], %s651
          %s654 = ssub.s32 1024, 1024
          %655 = vsyncadd %s649, %s654
          %s656 = smul.addr %s50, 64
          %s657 = scalar_lea.hbm %s14, %s656
          %s658 = sshll.u32 %s652, 4
          %s659 = int_to_ptr.vmem [resolvable:$true] %s658
          %664 = dma.hbm_to_vmem [thread:$0]  %s657, 1024, %s659, %s649, 128, 64, 4
        $region80: #{tirg_forward.3} parent=67 // pred_fallthru
          _
        // Predicated region
        $region81: #{tirg_forward.3} parent=67 // pred_check
          %p665 = pneg %p404
        $region82: #{tirg_forward.3} parent=67 // pred_check_branch
          %667 = sbr.rel (%p665) target = $region84
        $region83: #{tirg_forward.3} parent=67 // pred_region
          %s668 = sand.u32 %s42, 1
          %s669 = scalar_lea.sflag [#allocation18], %s668
          %s670 = sand.u32 %s394, 1
          %s671 = smul.addr %s670, 64
          %s672 = scalar_lea.vmem [#allocation19], %s671
          %s674 = ssub.s32 1024, 1024
          %675 = vsyncadd %s669, %s674
          %s676 = smul.addr %s50, 64
          %s677 = scalar_lea.hbm %s15, %s676
          %s678 = sshll.u32 %s672, 4
          %s679 = int_to_ptr.vmem [resolvable:$true] %s678
          %684 = dma.hbm_to_vmem [thread:$0]  %s677, 1024, %s679, %s669, 128, 64, 4
        $region84: #{tirg_forward.3} parent=67 // pred_fallthru
          _
        // Predicated region
        $region85: #{tirg_forward.3} parent=67 // pred_check
          %p685 = pneg %p430
        $region86: #{tirg_forward.3} parent=67 // pred_check_branch
          %687 = sbr.rel (%p685) target = $region88
        $region87: #{tirg_forward.3} parent=67 // pred_region
          %s688 = sand.u32 %s420, 1
          %s689 = scalar_lea.sflag [#allocation21], %s688
          %s690 = sand.u32 %s420, 1
          %s691 = scalar_lea.vmem [#allocation20], %s690
          %s693 = ssub.s32 16, 16
          %694 = vsyncadd %s689, %s693
          %s695 = smul.addr %s50, 16
          %s696 = scalar_lea.hbm %s16, %s695
          %s698 = sshll.u32 %s691, 4
          %s699 = int_to_ptr.vmem [resolvable:$true] %s698
          %701 = dma.hbm_to_vmem [thread:$0]  %s696, 16, %s699, %s689
        $region88: #{tirg_forward.3} parent=67 // pred_fallthru
          _
        // Predicated region
        $region89: #{tirg_forward.3} parent=67 // pred_check
          %p702 = pneg %p456
        $region90: #{tirg_forward.3} parent=67 // pred_check_branch
          %704 = sbr.rel (%p702) target = $region92
        $region91: #{tirg_forward.3} parent=67 // pred_region
          %s705 = smul.u32 16, %s50
          %p706 = scmp.lt.s32.totalorder %s705, 31
          %s707 = scalar_select %p706, %s705, 31
          %s708 = smul.addr %s707, 4
          %s709 = scalar_lea.vmem %s17, %s708
          %s710 = smul.u32 16, %s50
        $region92: #{tirg_forward.3} parent=67 // pred_fallthru
          _
      $region68: #{tirg_forward.3} parent=5 // pred_fallthru
        _
      %p711 = scmp.le.s32.totalorder 1, %s42
      %p712 = scmp.lt.s32.totalorder %s42, 5
      %p713 = pnand %p711, %p712
      %p714 = pneg %p713
      // Predicated region
      $region93: #{tirg_forward.3} parent=5 // pred_check
        _
      $region94: #{tirg_forward.3} parent=5 // pred_check_branch
        %716 = sbr.rel (%p713) target = $region96
      $region95: #{tirg_forward.3} parent=5 // pred_region
        %s717 = ssub.s32 %s42, 1
        // Predicated region
        $region97: #{tirg_forward.3} parent=95 // pred_check
          %p718 = pneg %p75
        $region98: #{tirg_forward.3} parent=95 // pred_check_branch
          %720 = sbr.rel (%p718) target = $region100
        $region99: #{tirg_forward.3} parent=95 // pred_region
          %721 = dma.done [#allocation9], 16
        $region100: #{tirg_forward.3} parent=95 // pred_fallthru
          _
        %s722 = sand.u32 %s88, 1
        %s723 = scalar_lea.sflag [#allocation7], %s722
        %s724 = sand.u32 %s88, 1
        %s725 = smul.addr %s724, 16
        %s726 = scalar_lea.vmem [#allocation10], %s725
        // Predicated region
        $region101: #{tirg_forward.3} parent=95 // pred_check
          %p727 = pneg %p101
        $region102: #{tirg_forward.3} parent=95 // pred_check_branch
          %729 = sbr.rel (%p727) target = $region104
        $region103: #{tirg_forward.3} parent=95 // pred_region
          %730 = dma.done %s723, 256
        $region104: #{tirg_forward.3} parent=95 // pred_fallthru
          _
        %s731 = sand.u32 %s47, 1
        %s732 = scalar_lea.sflag [#allocation12], %s731
        %s733 = sand.u32 %s114, 1
        %s734 = smul.addr %s733, 16
        %s735 = scalar_lea.vmem [#allocation11], %s734
        // Predicated region
        $region105: #{tirg_forward.3} parent=95 // pred_check
          %p736 = pneg %p127
        $region106: #{tirg_forward.3} parent=95 // pred_check_branch
          %738 = sbr.rel (%p736) target = $region108
        $region107: #{tirg_forward.3} parent=95 // pred_region
          %739 = dma.done %s732, 256
        $region108: #{tirg_forward.3} parent=95 // pred_fallthru
          _
        // Predicated region
        $region109: #{tirg_forward.3} parent=95 // pred_check
          %p740 = pneg %p316
        $region110: #{tirg_forward.3} parent=95 // pred_check_branch
          %742 = sbr.rel (%p740) target = $region112
        $region111: #{tirg_forward.3} parent=95 // pred_region
          %743 = dma.done [#allocation12], 1024
        $region112: #{tirg_forward.3} parent=95 // pred_fallthru
          _
        // Predicated region
        $region113: #{tirg_forward.3} parent=95 // pred_check
          %p744 = pneg %p337
        $region114: #{tirg_forward.3} parent=95 // pred_check_branch
          %746 = sbr.rel (%p744) target = $region116
        $region115: #{tirg_forward.3} parent=95 // pred_region
          %747 = dma.done [#allocation15], 1024
        $region116: #{tirg_forward.3} parent=95 // pred_fallthru
          _
        // Predicated region
        $region117: #{tirg_forward.3} parent=95 // pred_check
          %p748 = pneg %p358
        $region118: #{tirg_forward.3} parent=95 // pred_check_branch
          %750 = sbr.rel (%p748) target = $region120
        $region119: #{tirg_forward.3} parent=95 // pred_region
          %751 = dma.done [#allocation15], 16
        $region120: #{tirg_forward.3} parent=95 // pred_fallthru
          _
        %s752 = sand.u32 %s47, 1
        %s753 = scalar_lea.sflag [#allocation18], %s752
        %s754 = sand.u32 %s371, 1
        %s755 = smul.addr %s754, 64
        %s756 = scalar_lea.vmem [#allocation17], %s755
        // Predicated region
        $region121: #{tirg_forward.3} parent=95 // pred_check
          %p757 = pneg %p384
        $region122: #{tirg_forward.3} parent=95 // pred_check_branch
          %759 = sbr.rel (%p757) target = $region124
        $region123: #{tirg_forward.3} parent=95 // pred_region
          %760 = dma.done %s753, 1024
        $region124: #{tirg_forward.3} parent=95 // pred_fallthru
          _
        %s761 = sand.u32 %s47, 1
        %s762 = scalar_lea.sflag [#allocation18], %s761
        %s763 = sand.u32 %s397, 1
        %s764 = smul.addr %s763, 64
        %s765 = scalar_lea.vmem [#allocation19], %s764
        // Predicated region
        $region125: #{tirg_forward.3} parent=95 // pred_check
          %p766 = pneg %p410
        $region126: #{tirg_forward.3} parent=95 // pred_check_branch
          %768 = sbr.rel (%p766) target = $region128
        $region127: #{tirg_forward.3} parent=95 // pred_region
          %769 = dma.done %s762, 1024
        $region128: #{tirg_forward.3} parent=95 // pred_fallthru
          _
        %s770 = sand.u32 %s423, 1
        %s771 = scalar_lea.sflag [#allocation21], %s770
        %s772 = sand.u32 %s423, 1
        %s773 = scalar_lea.vmem [#allocation20], %s772
        // Predicated region
        $region129: #{tirg_forward.3} parent=95 // pred_check
          %p774 = pneg %p436
        $region130: #{tirg_forward.3} parent=95 // pred_check_branch
          %776 = sbr.rel (%p774) target = $region132
        $region131: #{tirg_forward.3} parent=95 // pred_region
          %777 = dma.done %s771, 16
        $region132: #{tirg_forward.3} parent=95 // pred_fallthru
          _
        %778 = sfence
        %p779 = pneg %p75
        %p780 = pneg %p72
        %s781 = sand.u32 %s88, 1
        %s782 = scalar_lea.sflag [#allocation7], %s781
        %s783 = sand.u32 %s88, 1
        %s784 = smul.addr %s783, 16
        %s785 = scalar_lea.vmem [#allocation10], %s784
        %p786 = pneg %p101
        %p787 = pneg %p98
        %s788 = sand.u32 %s47, 1
        %s789 = scalar_lea.sflag [#allocation12], %s788
        %s790 = sand.u32 %s114, 1
        %s791 = smul.addr %s790, 16
        %s792 = scalar_lea.vmem [#allocation11], %s791
        %p793 = pneg %p127
        %p794 = pneg %p124
        %p795 = pneg %p148
        %p796 = pneg %p145
        %p797 = pneg %p169
        %p798 = pneg %p166
        %p799 = pneg %p190
        %p800 = pneg %p187
        %p801 = pneg %p211
        %p802 = pneg %p208
        %p803 = pneg %p232
        %p804 = pneg %p229
        %p805 = pneg %p253
        %p806 = pneg %p250
        %p807 = pneg %p274
        %p808 = pneg %p271
        %p809 = pneg %p295
        %p810 = pneg %p292
        %p811 = pneg %p316
        %p812 = pneg %p313
        %p813 = pneg %p337
        %p814 = pneg %p334
        %p815 = pneg %p358
        %p816 = pneg %p355
        %s817 = sand.u32 %s47, 1
        %s818 = scalar_lea.sflag [#allocation18], %s817
        %s819 = sand.u32 %s371, 1
        %s820 = smul.addr %s819, 64
        %s821 = scalar_lea.vmem [#allocation17], %s820
        %p822 = pneg %p384
        %p823 = pneg %p381
        %s824 = sand.u32 %s47, 1
        %s825 = scalar_lea.sflag [#allocation18], %s824
        %s826 = sand.u32 %s397, 1
        %s827 = smul.addr %s826, 64
        %s828 = scalar_lea.vmem [#allocation19], %s827
        %p829 = pneg %p410
        %p830 = pneg %p407
        %s831 = sand.u32 %s423, 1
        %s832 = scalar_lea.sflag [#allocation21], %s831
        %s833 = sand.u32 %s423, 1
        %s834 = scalar_lea.vmem [#allocation20], %s833
        %p835 = pneg %p436
        %p836 = pneg %p433
        %s837 = smul.u32 16, %s52
        %p838 = scmp.lt.s32.totalorder %s837, 31
        %s839 = scalar_select %p838, %s837, 31
        %s840 = smul.addr %s839, 4
        %s841 = scalar_lea.vmem %s17, %s840
        %p842 = pneg %p462
        %p843 = pneg %p459
        %p844 = pneg %p483
        %p845 = pneg %p480
        %p846 = pneg %p509
        %p847 = pneg %p506
        %s848 = sand.u32 %s496, 1
        %s849 = scalar_lea.sflag [#allocation8], %s848
        %s850 = sand.u32 %s496, 1
        %s851 = smul.addr %s850, 16
        %s852 = scalar_lea.vmem [#allocation22], %s851
        %s853 = smul.u32 2, %s51
        %s854 = smul.u32 2, %s51
        %s855 = smul.u32 16, %s52
        %p856 = scmp.lt.s32.totalorder %s855, 31
        %s857 = scalar_select %p856, %s855, 31
        %s858 = smul.addr %s857, 4
        %s859 = scalar_lea.vmem %s17, %s858
        %s860 = smul.u32 16, %s52
        %s861 = smul.u32 2, %s51
        %p863 = scmp.eq.s32.totalorder %s52, 0
        // Predicated region
        $region133: #{tirg_forward.3} parent=95 // pred_check
          %p864 = pneg %p863
        $region134: #{tirg_forward.3} parent=95 // pred_check_branch
          %866 = sbr.rel (%p864) target = $region136
        $region135: #{tirg_forward.3} parent=95 // pred_region
          %v867 = vld [vmem:[%s726] sm:$0xff]
          %v868 = vld [vmem:[%s726 + $0x8] sm:$0xff]
          %v869 = vld [vmem:[%s735] sm:$0xff]
          %v870 = vld [vmem:[%s735 + $0x8] sm:$0xff]
          %v871 = vld [vmem:[%s3] sm:$0x1]
          %v873 = vlaneseq
          %v874 = vshrl.u32 %v873, 7
          %v875 = vsub.s32 0, %v874
          %v876 = vrot.slane %v871, %v875
          %v878 = vmul.f32 %v867, %v876
          %v879 = vmul.f32 %v868, %v876
          %v880 = vld [vmem:[%s4] sm:$0x1]
          %v882 = vlaneseq
          %v883 = vshrl.u32 %v882, 7
          %v884 = vsub.s32 0, %v883
          %v885 = vrot.slane %v880, %v884
          %v887 = vadd.f32 %v878, %v885
          %v888 = vadd.f32 %v879, %v885
          %v889 = vmax.f32 %v887, 0.0
          %v890 = vmax.f32 %v888, 0.0
          %v891 = vpack.c.bf16 %v890, %v889
          %v892 = vld [vmem:[%s5] sm:$0x1]
          %v894 = vlaneseq
          %v895 = vshrl.u32 %v894, 7
          %v896 = vsub.s32 0, %v895
          %v897 = vrot.slane %v892, %v896
          %v899 = vmul.f32 %v869, %v897
          %v900 = vmul.f32 %v870, %v897
          %v901 = vld [vmem:[%s6] sm:$0x1]
          %v903 = vlaneseq
          %v904 = vshrl.u32 %v903, 7
          %v905 = vsub.s32 0, %v904
          %v906 = vrot.slane %v901, %v905
          %v908 = vadd.f32 %v899, %v906
          %v909 = vadd.f32 %v900, %v906
          %v910 = vmax.f32 %v908, 0.0
          %v911 = vmax.f32 %v909, 0.0
          %v912 = vpack.c.bf16 %v911, %v910
          %v913 = vld [vmem:[#allocation13] sm:$0xf]
          %v914 = vld [vmem:[#allocation13 + $0x4] sm:$0xf]
          %v915 = vld [vmem:[#allocation13 + $0x8] sm:$0xf]
          %v916 = vld [vmem:[#allocation13 + $0xc] sm:$0xf]
          %v917 = vld [vmem:[#allocation13 + $0x10] sm:$0xf]
          %v918 = vld [vmem:[#allocation13 + $0x14] sm:$0xf]
          %v919 = vld [vmem:[#allocation13 + $0x18] sm:$0xf]
          %v920 = vld [vmem:[#allocation13 + $0x1c] sm:$0xf]
          %v921 = vld [vmem:[#allocation13 + $0x20] sm:$0xf]
          %v922 = vld [vmem:[#allocation13 + $0x24] sm:$0xf]
          %v923 = vld [vmem:[#allocation13 + $0x28] sm:$0xf]
          %v924 = vld [vmem:[#allocation13 + $0x2c] sm:$0xf]
          %v925 = vld [vmem:[#allocation13 + $0x30] sm:$0xf]
          %v926 = vld [vmem:[#allocation13 + $0x34] sm:$0xf]
          %v927 = vld [vmem:[#allocation13 + $0x38] sm:$0xf]
          %v928 = vld [vmem:[#allocation13 + $0x3c] sm:$0xf]
          %v929 = vld [vmem:[#allocation14] sm:$0xf]
          %v930 = vld [vmem:[#allocation14 + $0x4] sm:$0xf]
          %v931 = vld [vmem:[#allocation14 + $0x8] sm:$0xf]
          %v932 = vld [vmem:[#allocation14 + $0xc] sm:$0xf]
          %v933 = vld [vmem:[#allocation14 + $0x10] sm:$0xf]
          %v934 = vld [vmem:[#allocation14 + $0x14] sm:$0xf]
          %v935 = vld [vmem:[#allocation14 + $0x18] sm:$0xf]
          %v936 = vld [vmem:[#allocation14 + $0x1c] sm:$0xf]
          %v937 = vld [vmem:[#allocation14 + $0x20] sm:$0xf]
          %v938 = vld [vmem:[#allocation14 + $0x24] sm:$0xf]
          %v939 = vld [vmem:[#allocation14 + $0x28] sm:$0xf]
          %v940 = vld [vmem:[#allocation14 + $0x2c] sm:$0xf]
          %v941 = vld [vmem:[#allocation14 + $0x30] sm:$0xf]
          %v942 = vld [vmem:[#allocation14 + $0x34] sm:$0xf]
          %v943 = vld [vmem:[#allocation14 + $0x38] sm:$0xf]
          %v944 = vld [vmem:[#allocation14 + $0x3c] sm:$0xf]
          %v961 = vunpack.c.l.b16 %v929
          %v962 = vunpack.c.l.b16 %v930
          %v963 = vunpack.c.l.b16 %v931
          %v964 = vunpack.c.l.b16 %v932
          %v965 = vunpack.c.l.b16 %v933
          %v966 = vunpack.c.l.b16 %v934
          %v967 = vunpack.c.l.b16 %v935
          %v968 = vunpack.c.l.b16 %v936
          %v969 = vunpack.c.l.b16 %v937
          %v970 = vunpack.c.l.b16 %v938
          %v971 = vunpack.c.l.b16 %v939
          %v972 = vunpack.c.l.b16 %v940
          %v973 = vunpack.c.l.b16 %v941
          %v974 = vunpack.c.l.b16 %v942
          %v975 = vunpack.c.l.b16 %v943
          %v976 = vunpack.c.l.b16 %v944
          %v977 = vpack.c.b16 %v962, %v961
          %v978 = vpack.c.b16 %v964, %v963
          %v979 = vpack.c.b16 %v966, %v965
          %v980 = vpack.c.b16 %v968, %v967
          %v981 = vpack.c.b16 %v970, %v969
          %v982 = vpack.c.b16 %v972, %v971
          %v983 = vpack.c.b16 %v974, %v973
          %v984 = vpack.c.b16 %v976, %v975
          %993 = vmatprep.subr.bf16.mxu0 0
          %994 = vmatpush1.bf16.msra.mxu0 %v984
          %995 = vmatprep.subr.bf16.mxu0 0
          %996 = vmatpush1.bf16.msra.mxu0 %v983
          %997 = vmatprep.subr.bf16.mxu0 0
          %998 = vmatpush1.bf16.msra.mxu0 %v982
          %999 = vmatprep.subr.bf16.mxu0 0
          %1000 = vmatpush1.bf16.msra.mxu0 %v981
          %1001 = vmatprep.subr.bf16.mxu0 0
          %1002 = vmatpush1.bf16.msra.mxu0 %v980
          %1003 = vmatprep.subr.bf16.mxu0 0
          %1004 = vmatpush1.bf16.msra.mxu0 %v979
          %1005 = vmatprep.subr.bf16.mxu0 0
          %1006 = vmatpush1.bf16.msra.mxu0 %v978
          %1007 = vmatprep.subr.bf16.mxu0 0
          %1008 = vmatpush1.bf16.msra.mxu0 %v977
          %1009 = vmatprep.subr.bf16.mxu0 0
          %1010 = vmatpush2.bf16.msra.mxu0 0
          %1011 = vmatprep.subr.bf16.mxu0 0
          %1012 = vmatpush2.bf16.msra.mxu0 0
          %1013 = vmatprep.subr.bf16.mxu0 0
          %1014 = vmatpush2.bf16.msra.mxu0 0
          %1015 = vmatprep.subr.bf16.mxu0 0
          %1016 = vmatpush2.bf16.msra.mxu0 0
          %1017 = vmatprep.subr.bf16.mxu0 0
          %1018 = vmatpush2.bf16.msra.mxu0 0
          %1019 = vmatprep.subr.bf16.mxu0 0
          %1020 = vmatpush2.bf16.msra.mxu0 0
          %1021 = vmatprep.subr.bf16.mxu0 0
          %1022 = vmatpush2.bf16.msra.mxu0 0
          %1023 = vmatprep.subr.bf16.mxu0 0
          %1024 = vmatpush2.bf16.msra.mxu0 0
          %1025 = vmatprep.mubr.bf16.mxu0 0
          %1026 = vmatmul.mubr.bf16.gmra.mxu0 %v912
          %v1027 = vpop.f32.mrf.mxu0
          %v1028 = vadd.f32 0.0, %v1027
          %v1029 = vpop.f32.mrf.mxu0
          %v1030 = vpop.f32.mrf.mxu0
          %v1031 = vadd.f32 0.0, %v1030
          %v1032 = vpop.f32.mrf.mxu0
          %1033 = vdwg.mxu0
          %v1050 = vunpack.c.l.b16 %v913
          %v1051 = vunpack.c.l.b16 %v914
          %v1052 = vunpack.c.l.b16 %v915
          %v1053 = vunpack.c.l.b16 %v916
          %v1054 = vunpack.c.l.b16 %v917
          %v1055 = vunpack.c.l.b16 %v918
          %v1056 = vunpack.c.l.b16 %v919
          %v1057 = vunpack.c.l.b16 %v920
          %v1058 = vunpack.c.l.b16 %v921
          %v1059 = vunpack.c.l.b16 %v922
          %v1060 = vunpack.c.l.b16 %v923
          %v1061 = vunpack.c.l.b16 %v924
          %v1062 = vunpack.c.l.b16 %v925
          %v1063 = vunpack.c.l.b16 %v926
          %v1064 = vunpack.c.l.b16 %v927
          %v1065 = vunpack.c.l.b16 %v928
          %v1066 = vpack.c.b16 %v1051, %v1050
          %v1067 = vpack.c.b16 %v1053, %v1052
          %v1068 = vpack.c.b16 %v1055, %v1054
          %v1069 = vpack.c.b16 %v1057, %v1056
          %v1070 = vpack.c.b16 %v1059, %v1058
          %v1071 = vpack.c.b16 %v1061, %v1060
          %v1072 = vpack.c.b16 %v1063, %v1062
          %v1073 = vpack.c.b16 %v1065, %v1064
          %1082 = vmatprep.subr.bf16.mxu0 0
          %1083 = vmatpush1.bf16.msra.mxu0 %v1073
          %1084 = vmatprep.subr.bf16.mxu0 0
          %1085 = vmatpush1.bf16.msra.mxu0 %v1072
          %1086 = vmatprep.subr.bf16.mxu0 0
          %1087 = vmatpush1.bf16.msra.mxu0 %v1071
          %1088 = vmatprep.subr.bf16.mxu0 0
          %1089 = vmatpush1.bf16.msra.mxu0 %v1070
          %1090 = vmatprep.subr.bf16.mxu0 0
          %1091 = vmatpush1.bf16.msra.mxu0 %v1069
          %1092 = vmatprep.subr.bf16.mxu0 0
          %1093 = vmatpush1.bf16.msra.mxu0 %v1068
          %1094 = vmatprep.subr.bf16.mxu0 0
          %1095 = vmatpush1.bf16.msra.mxu0 %v1067
          %1096 = vmatprep.subr.bf16.mxu0 0
          %1097 = vmatpush1.bf16.msra.mxu0 %v1066
          %1098 = vmatprep.subr.bf16.mxu0 0
          %1099 = vmatpush2.bf16.msra.mxu0 0
          %1100 = vmatprep.subr.bf16.mxu0 0
          %1101 = vmatpush2.bf16.msra.mxu0 0
          %1102 = vmatprep.subr.bf16.mxu0 0
          %1103 = vmatpush2.bf16.msra.mxu0 0
          %1104 = vmatprep.subr.bf16.mxu0 0
          %1105 = vmatpush2.bf16.msra.mxu0 0
          %1106 = vmatprep.subr.bf16.mxu0 0
          %1107 = vmatpush2.bf16.msra.mxu0 0
          %1108 = vmatprep.subr.bf16.mxu0 0
          %1109 = vmatpush2.bf16.msra.mxu0 0
          %1110 = vmatprep.subr.bf16.mxu0 0
          %1111 = vmatpush2.bf16.msra.mxu0 0
          %1112 = vmatprep.subr.bf16.mxu0 0
          %1113 = vmatpush2.bf16.msra.mxu0 0
          %1114 = vmatprep.mubr.bf16.mxu0 0
          %1115 = vmatmul.mubr.bf16.gmra.mxu0 %v891
          %v1116 = vpop.f32.mrf.mxu0
          %v1117 = vadd.f32 %v1028, %v1116
          %v1118 = vpop.f32.mrf.mxu0
          %v1119 = vpop.f32.mrf.mxu0
          %v1120 = vadd.f32 %v1031, %v1119
          %v1121 = vpop.f32.mrf.mxu0
          %1122 = vdwg.mxu0
          %v1123 = vld [vmem:[#allocation16] sm:$0x1]
          %v1125 = vlaneseq
          %v1126 = vshrl.u32 %v1125, 7
          %v1127 = vsub.s32 0, %v1126
          %v1128 = vrot.slane %v1123, %v1127
          %v1130 = vadd.f32 %v1117, %v1128
          %v1131 = vadd.f32 %v1120, %v1128
          %1132 = vst [vmem:[#allocation2] sm:$0xff] %v1130
          %1133 = vst [vmem:[#allocation2 + $0x8] sm:$0xff] %v1131
          %1134 = vst [vmem:[#allocation3] sm:$0xff] 0.0
          %1135 = vst [vmem:[#allocation3 + $0x8] sm:$0xff] 0.0
          %v1136 = vld [vmem:[%s7] sm:$0x1]
          %v1138 = vlaneseq
          %v1139 = vshrl.u32 %v1138, 7
          %v1140 = vsub.s32 0, %v1139
          %v1141 = vrot.slane %v1136, %v1140
          %v1143 = vmul.f32 %v867, %v1141
          %v1144 = vmul.f32 %v868, %v1141
          %v1145 = vld [vmem:[%s8] sm:$0x1]
          %v1147 = vlaneseq
          %v1148 = vshrl.u32 %v1147, 7
          %v1149 = vsub.s32 0, %v1148
          %v1150 = vrot.slane %v1145, %v1149
          %v1152 = vadd.f32 %v1143, %v1150
          %v1153 = vadd.f32 %v1144, %v1150
          %v1154 = vmax.f32 %v1152, 0.0
          %v1155 = vmax.f32 %v1153, 0.0
          %v1156 = vpack.c.bf16 %v1155, %v1154
          %v1158 = vunpack.c.l.b16 %v1156
          %v1159 = vunpack.c.h.b16 %v1156
          %v1160 = vpack.c.b16 %v1158, %v1158
          %v1161 = vpack.c.b16 %v1159, %v1159
          %1164 = vst [vmem:[#allocation4] sm:$0xf] %v1160
          %1165 = vst [vmem:[#allocation4 + $0x4] sm:$0xf] %v1161
          %v1166 = vld [vmem:[%s9] sm:$0x1]
          %v1168 = vlaneseq
          %v1169 = vshrl.u32 %v1168, 7
          %v1170 = vsub.s32 0, %v1169
          %v1171 = vrot.slane %v1166, %v1170
          %v1173 = vmul.f32 %v869, %v1171
          %v1174 = vmul.f32 %v870, %v1171
          %v1175 = vld [vmem:[%s10] sm:$0x1]
          %v1177 = vlaneseq
          %v1178 = vshrl.u32 %v1177, 7
          %v1179 = vsub.s32 0, %v1178
          %v1180 = vrot.slane %v1175, %v1179
          %v1182 = vadd.f32 %v1173, %v1180
          %v1183 = vadd.f32 %v1174, %v1180
          %v1184 = vmax.f32 %v1182, 0.0
          %v1185 = vmax.f32 %v1183, 0.0
          %v1186 = vpack.c.bf16 %v1185, %v1184
          %v1188 = vunpack.c.l.b16 %v1186
          %v1189 = vunpack.c.h.b16 %v1186
          %v1190 = vpack.c.b16 %v1188, %v1188
          %v1191 = vpack.c.b16 %v1189, %v1189
          %1194 = vst [vmem:[#allocation5] sm:$0xf] %v1190
          %1195 = vst [vmem:[#allocation5 + $0x4] sm:$0xf] %v1191
        $region136: #{tirg_forward.3} parent=95 // pred_fallthru
          _
        %v1196 = vld [vmem:[#allocation4] sm:$0xf]
        %v1197 = vld [vmem:[#allocation4 + $0x4] sm:$0xf]
        %v1198 = vld [vmem:[%s756] sm:$0xf]
        %v1199 = vld [vmem:[%s756 + $0x4] sm:$0xf]
        %v1200 = vld [vmem:[%s756 + $0x8] sm:$0xf]
        %v1201 = vld [vmem:[%s756 + $0xc] sm:$0xf]
        %v1202 = vld [vmem:[%s756 + $0x10] sm:$0xf]
        %v1203 = vld [vmem:[%s756 + $0x14] sm:$0xf]
        %v1204 = vld [vmem:[%s756 + $0x18] sm:$0xf]
        %v1205 = vld [vmem:[%s756 + $0x1c] sm:$0xf]
        %v1206 = vld [vmem:[%s756 + $0x20] sm:$0xf]
        %v1207 = vld [vmem:[%s756 + $0x24] sm:$0xf]
        %v1208 = vld [vmem:[%s756 + $0x28] sm:$0xf]
        %v1209 = vld [vmem:[%s756 + $0x2c] sm:$0xf]
        %v1210 = vld [vmem:[%s756 + $0x30] sm:$0xf]
        %v1211 = vld [vmem:[%s756 + $0x34] sm:$0xf]
        %v1212 = vld [vmem:[%s756 + $0x38] sm:$0xf]
        %v1213 = vld [vmem:[%s756 + $0x3c] sm:$0xf]
        %v1214 = vld [vmem:[#allocation5] sm:$0xf]
        %v1215 = vld [vmem:[#allocation5 + $0x4] sm:$0xf]
        %v1216 = vld [vmem:[%s765] sm:$0xf]
        %v1217 = vld [vmem:[%s765 + $0x4] sm:$0xf]
        %v1218 = vld [vmem:[%s765 + $0x8] sm:$0xf]
        %v1219 = vld [vmem:[%s765 + $0xc] sm:$0xf]
        %v1220 = vld [vmem:[%s765 + $0x10] sm:$0xf]
        %v1221 = vld [vmem:[%s765 + $0x14] sm:$0xf]
        %v1222 = vld [vmem:[%s765 + $0x18] sm:$0xf]
        %v1223 = vld [vmem:[%s765 + $0x1c] sm:$0xf]
        %v1224 = vld [vmem:[%s765 + $0x20] sm:$0xf]
        %v1225 = vld [vmem:[%s765 + $0x24] sm:$0xf]
        %v1226 = vld [vmem:[%s765 + $0x28] sm:$0xf]
        %v1227 = vld [vmem:[%s765 + $0x2c] sm:$0xf]
        %v1228 = vld [vmem:[%s765 + $0x30] sm:$0xf]
        %v1229 = vld [vmem:[%s765 + $0x34] sm:$0xf]
        %v1230 = vld [vmem:[%s765 + $0x38] sm:$0xf]
        %v1231 = vld [vmem:[%s765 + $0x3c] sm:$0xf]
        %v1234 = vunpack.c.l.b16 %v1214
        %v1235 = vunpack.c.l.b16 %v1215
        %v1236 = vpack.c.b16 %v1235, %v1234
        %v1254 = vunpack.c.l.b16 %v1216
        %v1255 = vunpack.c.l.b16 %v1217
        %v1256 = vunpack.c.l.b16 %v1218
        %v1257 = vunpack.c.l.b16 %v1219
        %v1258 = vunpack.c.l.b16 %v1220
        %v1259 = vunpack.c.l.b16 %v1221
        %v1260 = vunpack.c.l.b16 %v1222
        %v1261 = vunpack.c.l.b16 %v1223
        %v1262 = vunpack.c.l.b16 %v1224
        %v1263 = vunpack.c.l.b16 %v1225
        %v1264 = vunpack.c.l.b16 %v1226
        %v1265 = vunpack.c.l.b16 %v1227
        %v1266 = vunpack.c.l.b16 %v1228
        %v1267 = vunpack.c.l.b16 %v1229
        %v1268 = vunpack.c.l.b16 %v1230
        %v1269 = vunpack.c.l.b16 %v1231
        %v1270 = vpack.c.b16 %v1255, %v1254
        %v1271 = vpack.c.b16 %v1257, %v1256
        %v1272 = vpack.c.b16 %v1259, %v1258
        %v1273 = vpack.c.b16 %v1261, %v1260
        %v1274 = vpack.c.b16 %v1263, %v1262
        %v1275 = vpack.c.b16 %v1265, %v1264
        %v1276 = vpack.c.b16 %v1267, %v1266
        %v1277 = vpack.c.b16 %v1269, %v1268
        %1286 = vmatprep.subr.bf16.mxu0 0
        %1287 = vmatpush1.bf16.msra.mxu0 %v1277
        %1288 = vmatprep.subr.bf16.mxu0 0
        %1289 = vmatpush1.bf16.msra.mxu0 %v1276
        %1290 = vmatprep.subr.bf16.mxu0 0
        %1291 = vmatpush1.bf16.msra.mxu0 %v1275
        %1292 = vmatprep.subr.bf16.mxu0 0
        %1293 = vmatpush1.bf16.msra.mxu0 %v1274
        %1294 = vmatprep.subr.bf16.mxu0 0
        %1295 = vmatpush1.bf16.msra.mxu0 %v1273
        %1296 = vmatprep.subr.bf16.mxu0 0
        %1297 = vmatpush1.bf16.msra.mxu0 %v1272
        %1298 = vmatprep.subr.bf16.mxu0 0
        %1299 = vmatpush1.bf16.msra.mxu0 %v1271
        %1300 = vmatprep.subr.bf16.mxu0 0
        %1301 = vmatpush1.bf16.msra.mxu0 %v1270
        %1302 = vmatprep.subr.bf16.mxu0 0
        %1303 = vmatpush2.bf16.msra.mxu0 0
        %1304 = vmatprep.subr.bf16.mxu0 0
        %1305 = vmatpush2.bf16.msra.mxu0 0
        %1306 = vmatprep.subr.bf16.mxu0 0
        %1307 = vmatpush2.bf16.msra.mxu0 0
        %1308 = vmatprep.subr.bf16.mxu0 0
        %1309 = vmatpush2.bf16.msra.mxu0 0
        %1310 = vmatprep.subr.bf16.mxu0 0
        %1311 = vmatpush2.bf16.msra.mxu0 0
        %1312 = vmatprep.subr.bf16.mxu0 0
        %1313 = vmatpush2.bf16.msra.mxu0 0
        %1314 = vmatprep.subr.bf16.mxu0 0
        %1315 = vmatpush2.bf16.msra.mxu0 0
        %1316 = vmatprep.subr.bf16.mxu0 0
        %1317 = vmatpush2.bf16.msra.mxu0 0
        %1318 = vmatprep.mubr.bf16.mxu0 0
        %1319 = vmatmul.mubr.bf16.gmra.mxu0 %v1236
        %v1320 = vpop.f32.mrf.mxu0
        %v1321 = vadd.f32 0.0, %v1320
        %v1322 = vpop.f32.mrf.mxu0
        %v1323 = vpop.f32.mrf.mxu0
        %v1324 = vadd.f32 0.0, %v1323
        %v1325 = vpop.f32.mrf.mxu0
        %1326 = vdwg.mxu0
        %v1329 = vunpack.c.l.b16 %v1196
        %v1330 = vunpack.c.l.b16 %v1197
        %v1331 = vpack.c.b16 %v1330, %v1329
        %v1349 = vunpack.c.l.b16 %v1198
        %v1350 = vunpack.c.l.b16 %v1199
        %v1351 = vunpack.c.l.b16 %v1200
        %v1352 = vunpack.c.l.b16 %v1201
        %v1353 = vunpack.c.l.b16 %v1202
        %v1354 = vunpack.c.l.b16 %v1203
        %v1355 = vunpack.c.l.b16 %v1204
        %v1356 = vunpack.c.l.b16 %v1205
        %v1357 = vunpack.c.l.b16 %v1206
        %v1358 = vunpack.c.l.b16 %v1207
        %v1359 = vunpack.c.l.b16 %v1208
        %v1360 = vunpack.c.l.b16 %v1209
        %v1361 = vunpack.c.l.b16 %v1210
        %v1362 = vunpack.c.l.b16 %v1211
        %v1363 = vunpack.c.l.b16 %v1212
        %v1364 = vunpack.c.l.b16 %v1213
        %v1365 = vpack.c.b16 %v1350, %v1349
        %v1366 = vpack.c.b16 %v1352, %v1351
        %v1367 = vpack.c.b16 %v1354, %v1353
        %v1368 = vpack.c.b16 %v1356, %v1355
        %v1369 = vpack.c.b16 %v1358, %v1357
        %v1370 = vpack.c.b16 %v1360, %v1359
        %v1371 = vpack.c.b16 %v1362, %v1361
        %v1372 = vpack.c.b16 %v1364, %v1363
        %1381 = vmatprep.subr.bf16.mxu0 0
        %1382 = vmatpush1.bf16.msra.mxu0 %v1372
        %1383 = vmatprep.subr.bf16.mxu0 0
        %1384 = vmatpush1.bf16.msra.mxu0 %v1371
        %1385 = vmatprep.subr.bf16.mxu0 0
        %1386 = vmatpush1.bf16.msra.mxu0 %v1370
        %1387 = vmatprep.subr.bf16.mxu0 0
        %1388 = vmatpush1.bf16.msra.mxu0 %v1369
        %1389 = vmatprep.subr.bf16.mxu0 0
        %1390 = vmatpush1.bf16.msra.mxu0 %v1368
        %1391 = vmatprep.subr.bf16.mxu0 0
        %1392 = vmatpush1.bf16.msra.mxu0 %v1367
        %1393 = vmatprep.subr.bf16.mxu0 0
        %1394 = vmatpush1.bf16.msra.mxu0 %v1366
        %1395 = vmatprep.subr.bf16.mxu0 0
        %1396 = vmatpush1.bf16.msra.mxu0 %v1365
        %1397 = vmatprep.subr.bf16.mxu0 0
        %1398 = vmatpush2.bf16.msra.mxu0 0
        %1399 = vmatprep.subr.bf16.mxu0 0
        %1400 = vmatpush2.bf16.msra.mxu0 0
        %1401 = vmatprep.subr.bf16.mxu0 0
        %1402 = vmatpush2.bf16.msra.mxu0 0
        %1403 = vmatprep.subr.bf16.mxu0 0
        %1404 = vmatpush2.bf16.msra.mxu0 0
        %1405 = vmatprep.subr.bf16.mxu0 0
        %1406 = vmatpush2.bf16.msra.mxu0 0
        %1407 = vmatprep.subr.bf16.mxu0 0
        %1408 = vmatpush2.bf16.msra.mxu0 0
        %1409 = vmatprep.subr.bf16.mxu0 0
        %1410 = vmatpush2.bf16.msra.mxu0 0
        %1411 = vmatprep.subr.bf16.mxu0 0
        %1412 = vmatpush2.bf16.msra.mxu0 0
        %1413 = vmatprep.mubr.bf16.mxu0 0
        %1414 = vmatmul.mubr.bf16.gmra.mxu0 %v1331
        %v1415 = vpop.f32.mrf.mxu0
        %v1416 = vadd.f32 %v1321, %v1415
        %v1417 = vpop.f32.mrf.mxu0
        %v1418 = vpop.f32.mrf.mxu0
        %v1419 = vadd.f32 %v1324, %v1418
        %v1420 = vpop.f32.mrf.mxu0
        %1421 = vdwg.mxu0
        %v1422 = vld [vmem:[%s773] sm:$0x1]
        %v1424 = vlaneseq
        %v1425 = vshrl.u32 %v1424, 7
        %v1426 = vsub.s32 0, %v1425
        %v1427 = vrot.slane %v1422, %v1426
        %v1429 = vadd.f32 %v1416, %v1427
        %v1430 = vadd.f32 %v1419, %v1427
        %v1431 = vmax.f32 %v1429, 0.0
        %v1432 = vmax.f32 %v1430, 0.0
        %v1433 = vpack.c.bf16 %v1432, %v1431
        %v1434 = vld [vmem:[#allocation3] sm:$0xff]
        %v1435 = vld [vmem:[#allocation3 + $0x8] sm:$0xff]
        %v1436 = vld [vmem:[%s859] sm:$0xf]
        %v1437 = vld [vmem:[%s859 + $0x4] sm:$0xf]
        %v1438 = vld [vmem:[%s859 + $0x8] sm:$0xf]
        %v1439 = vld [vmem:[%s859 + $0xc] sm:$0xf]
        %v1440 = vld [vmem:[%s859 + $0x10] sm:$0xf]
        %v1441 = vld [vmem:[%s859 + $0x14] sm:$0xf]
        %v1442 = vld [vmem:[%s859 + $0x18] sm:$0xf]
        %v1443 = vld [vmem:[%s859 + $0x1c] sm:$0xf]
        %v1444 = vld [vmem:[%s859 + $0x20] sm:$0xf]
        %v1445 = vld [vmem:[%s859 + $0x24] sm:$0xf]
        %v1446 = vld [vmem:[%s859 + $0x28] sm:$0xf]
        %v1447 = vld [vmem:[%s859 + $0x2c] sm:$0xf]
        %v1448 = vld [vmem:[%s859 + $0x30] sm:$0xf]
        %v1449 = vld [vmem:[%s859 + $0x34] sm:$0xf]
        %v1450 = vld [vmem:[%s859 + $0x38] sm:$0xf]
        %v1451 = vld [vmem:[%s859 + $0x3c] sm:$0xf]
        %v1468 = vunpack.c.l.b16 %v1436
        %v1469 = vunpack.c.l.b16 %v1437
        %v1470 = vunpack.c.l.b16 %v1438
        %v1471 = vunpack.c.l.b16 %v1439
        %v1472 = vunpack.c.l.b16 %v1440
        %v1473 = vunpack.c.l.b16 %v1441
        %v1474 = vunpack.c.l.b16 %v1442
        %v1475 = vunpack.c.l.b16 %v1443
        %v1476 = vunpack.c.l.b16 %v1444
        %v1477 = vunpack.c.l.b16 %v1445
        %v1478 = vunpack.c.l.b16 %v1446
        %v1479 = vunpack.c.l.b16 %v1447
        %v1480 = vunpack.c.l.b16 %v1448
        %v1481 = vunpack.c.l.b16 %v1449
        %v1482 = vunpack.c.l.b16 %v1450
        %v1483 = vunpack.c.l.b16 %v1451
        %v1484 = vpack.c.b16 %v1469, %v1468
        %v1485 = vpack.c.b16 %v1471, %v1470
        %v1486 = vpack.c.b16 %v1473, %v1472
        %v1487 = vpack.c.b16 %v1475, %v1474
        %v1488 = vpack.c.b16 %v1477, %v1476
        %v1489 = vpack.c.b16 %v1479, %v1478
        %v1490 = vpack.c.b16 %v1481, %v1480
        %v1491 = vpack.c.b16 %v1483, %v1482
        %1500 = vmatprep.subr.bf16.mxu0 0
        %1501 = vmatpush1.bf16.msra.mxu0 %v1491
        %1502 = vmatprep.subr.bf16.mxu0 0
        %1503 = vmatpush1.bf16.msra.mxu0 %v1490
        %1504 = vmatprep.subr.bf16.mxu0 0
        %1505 = vmatpush1.bf16.msra.mxu0 %v1489
        %1506 = vmatprep.subr.bf16.mxu0 0
        %1507 = vmatpush1.bf16.msra.mxu0 %v1488
        %1508 = vmatprep.subr.bf16.mxu0 0
        %1509 = vmatpush1.bf16.msra.mxu0 %v1487
        %1510 = vmatprep.subr.bf16.mxu0 0
        %1511 = vmatpush1.bf16.msra.mxu0 %v1486
        %1512 = vmatprep.subr.bf16.mxu0 0
        %1513 = vmatpush1.bf16.msra.mxu0 %v1485
        %1514 = vmatprep.subr.bf16.mxu0 0
        %1515 = vmatpush1.bf16.msra.mxu0 %v1484
        %1516 = vmatprep.subr.bf16.mxu0 0
        %1517 = vmatpush2.bf16.msra.mxu0 0
        %1518 = vmatprep.subr.bf16.mxu0 0
        %1519 = vmatpush2.bf16.msra.mxu0 0
        %1520 = vmatprep.subr.bf16.mxu0 0
        %1521 = vmatpush2.bf16.msra.mxu0 0
        %1522 = vmatprep.subr.bf16.mxu0 0
        %1523 = vmatpush2.bf16.msra.mxu0 0
        %1524 = vmatprep.subr.bf16.mxu0 0
        %1525 = vmatpush2.bf16.msra.mxu0 0
        %1526 = vmatprep.subr.bf16.mxu0 0
        %1527 = vmatpush2.bf16.msra.mxu0 0
        %1528 = vmatprep.subr.bf16.mxu0 0
        %1529 = vmatpush2.bf16.msra.mxu0 0
        %1530 = vmatprep.subr.bf16.mxu0 0
        %1531 = vmatpush2.bf16.msra.mxu0 0
        %1532 = vmatprep.mubr.bf16.mxu0 0
        %1533 = vmatmul.mubr.bf16.gmra.mxu0 %v1433
        %v1534 = vpop.f32.mrf.mxu0
        %v1535 = vadd.f32 0.0, %v1534
        %v1536 = vpop.f32.mrf.mxu0
        %v1537 = vpop.f32.mrf.mxu0
        %v1538 = vadd.f32 0.0, %v1537
        %v1539 = vpop.f32.mrf.mxu0
        %1540 = vdwg.mxu0
        %v1541 = vadd.f32 %v1434, %v1535
        %v1542 = vadd.f32 %v1435, %v1538
        %1543 = vst [vmem:[#allocation3] sm:$0xff] %v1541
        %1544 = vst [vmem:[#allocation3 + $0x8] sm:$0xff] %v1542
        %p1545 = scmp.eq.s32.totalorder %s52, 1
        // Predicated region
        $region137: #{tirg_forward.3} parent=95 // pred_check
          %p1546 = pneg %p1545
        $region138: #{tirg_forward.3} parent=95 // pred_check_branch
          %1548 = sbr.rel (%p1546) target = $region140
        $region139: #{tirg_forward.3} parent=95 // pred_region
          %s1549 = sld [smem:[#allocation6]]
          %s1550 = sld [smem:[#allocation6 + $0x1]]
          %v1551 = vld [vmem:[%s726] sm:$0xff]
          %v1552 = vld [vmem:[%s726 + $0x8] sm:$0xff]
          %v1553 = vld [vmem:[#allocation3] sm:$0xff]
          %v1554 = vld [vmem:[#allocation3 + $0x8] sm:$0xff]
          %v1555 = vld [vmem:[%s18] sm:$0x1]
          %v1557 = vlaneseq
          %v1558 = vshrl.u32 %v1557, 7
          %v1559 = vsub.s32 0, %v1558
          %v1560 = vrot.slane %v1555, %v1559
          %v1562 = vadd.f32 %v1553, %v1560
          %v1563 = vadd.f32 %v1554, %v1560
          %v1564 = vld [vmem:[#allocation2] sm:$0xff]
          %v1565 = vld [vmem:[#allocation2 + $0x8] sm:$0xff]
          %v1566 = vxor.u32 %v1564, 2147483648
          %v1567 = vxor.u32 %v1565, 2147483648
          %v1568 = vmul.f32 %v1566, 1.442695
          %v1569 = vpow.pop %v1568
          %v1570 = vmul.f32 %v1567, 1.442695
          %v1571 = vpow.pop %v1570
          %v1572 = vadd.f32 %v1569, 1.0
          %v1573 = vadd.f32 %v1571, 1.0
          %v1574 = vrcp.pop %v1572
          %v1575 = vmul.f32 1.0, %v1574
          %v1576 = vrcp.pop %v1573
          %v1577 = vmul.f32 1.0, %v1576
          %v1578 = vmul.f32 %v1575, %v1551
          %v1579 = vmul.f32 %v1577, %v1552
          %v1580 = vstv %s1549
          %v1581 = vmul.f32 %v1578, %v1580
          %v1582 = vmul.f32 %v1579, %v1580
          %v1583 = vstv %s1550
          %v1584 = vmul.f32 %v1562, %v1583
          %v1585 = vmul.f32 %v1563, %v1583
          %v1586 = vadd.f32 %v1581, %v1584
          %v1587 = vadd.f32 %v1582, %v1585
          %1588 = vst [vmem:[%s852] sm:$0xff] %v1586
          %1589 = vst [vmem:[%s852 + $0x8] sm:$0xff] %v1587
        $region140: #{tirg_forward.3} parent=95 // pred_fallthru
          _
        %s1590 = sand.u32 %s496, 1
        %s1591 = scalar_lea.sflag [#allocation8], %s1590
        %s1592 = sand.u32 %s496, 1
        %s1593 = smul.addr %s1592, 16
        %s1594 = scalar_lea.vmem [#allocation22], %s1593
        // Predicated region
        $region141: #{tirg_forward.3} parent=95 // pred_check
          %p1595 = pneg %p506
        $region142: #{tirg_forward.3} parent=95 // pred_check_branch
          %1597 = sbr.rel (%p1595) target = $region144
        $region143: #{tirg_forward.3} parent=95 // pred_region
          %s1598 = smul.u32 2, %s51
          %s1600 = ssub.s32 256, 256
          %1601 = vsyncadd %s1591, %s1600
          %s1602 = smul.addr %s1598, 128
          %s1603 = scalar_lea.hbm %s19, %s1602
          %s1604 = sshll.u32 %s1594, 4
          %s1605 = int_to_ptr.vmem [resolvable:$true] %s1604
          %1610 = dma.vmem_to_hbm [thread:$0]  %s1605, 256, %s1603, %s1591, 128, 128, 8
        $region144: #{tirg_forward.3} parent=95 // pred_fallthru
          _
      $region96: #{tirg_forward.3} parent=5 // pred_fallthru
        _
      %p1611 = scmp.le.s32.totalorder 2, %s42
      // Predicated region
      $region145: #{tirg_forward.3} parent=5 // pred_check
        %p1612 = pneg %p1611
      $region146: #{tirg_forward.3} parent=5 // pred_check_branch
        %1614 = sbr.rel (%p1612) target = $region148
      $region147: #{tirg_forward.3} parent=5 // pred_region
        %s1615 = ssub.s32 %s42, 2
        // Predicated region
        $region149: #{tirg_forward.3} parent=147 // pred_check
          %p1616 = pneg %p512
        $region150: #{tirg_forward.3} parent=147 // pred_check_branch
          %1618 = sbr.rel (%p1616) target = $region152
        $region151: #{tirg_forward.3} parent=147 // pred_region
          %s1619 = sand.u32 %s497, 1
          %s1620 = scalar_lea.sflag [#allocation8], %s1619
          %s1621 = sand.u32 %s497, 1
          %s1622 = smul.addr %s1621, 16
          %s1623 = scalar_lea.vmem [#allocation22], %s1622
          %1624 = dma.done %s1620, 256
        $region152: #{tirg_forward.3} parent=147 // pred_fallthru
          _
      $region148: #{tirg_forward.3} parent=5 // pred_fallthru
        _
    $region6: #{tirg_forward.3} parent=1 // loop_footer
      %s46 = sadd.s32 1, %s42
    $region7: #{tirg_forward.3} parent=1 // loop_footer_branch
      %41 = sbr.rel target = $region3
    $region8: #{tirg_forward.3} parent=1 // loop_exit
      _
    %1625 = vsyncpa [#allocation7], 1
    %s1626 = scalar_lea.sflag [#allocation7], 1
    %1627 = vsyncpa %s1626, 1
    %1628 = vsyncpa [#allocation12], 1
    %s1629 = scalar_lea.sflag [#allocation12], 1
    %1630 = vsyncpa %s1629, 1
    %1631 = vsyncpa [#allocation15], 1
    %1632 = vsyncpa [#allocation18], 1
    %s1633 = scalar_lea.sflag [#allocation18], 1
    %1634 = vsyncpa %s1633, 1
    %1635 = vsyncpa [#allocation21], 1
    %s1636 = scalar_lea.sflag [#allocation21], 1
    %1637 = vsyncpa %s1636, 1
    %1638 = vsyncpa [#allocation8], 1
    %s1639 = scalar_lea.sflag [#allocation8], 1
    %1640 = vsyncpa %s1639, 1
    %1641 = vsyncpa [#allocation9], 1
    %s1642 = scalar_lea.sflag [#allocation9], 1
    %1643 = vsyncpa %s1642, 1

</llo_original>
